<compile_context>
chip_gen: v6e
topology: v6e:2x2x1
jax: 0.10.0
libtpu: 0.0.40
codegen_flags: <defaults>
</compile_context>

<pallas_src>
import functools

import jax
import jax.numpy as jnp
from jax import lax
from jax.experimental import pallas as pl
from jax.experimental.pallas import tpu as pltpu


_SUB_CHUNK = 256  # rows per in-kernel sub-step (keeps live ranges ~16 vregs)


def _round_up(n, m):
    return ((n + m - 1) // m) * m


def _cdiv(a, b):
    return -(-a // b)


def _device_kind():
    try:
        return jax.devices()[0].device_kind.lower()
    except Exception:
        return ""


def mlp_kernel(x_ref,
               w1_ref, b1_ref,
               w2_ref, b2_ref,
               w3_ref, b3_ref,
               w4_ref, b4_ref,
               w5_ref, b5_ref,
               o_ref, *, sub_chunk, n_sub):
    """Fused forward pass for one batch tile.

    x_ref : (tile, F)
    w1 (F,64)  b1 (1,64)      -- batch-on-sublanes layers
    w2 (64,32) b2 (1,32)
    w3 (32,16) b3 (16,1)      -- batch-on-lanes layers (column biases)
    w4 (16,8)  b4 (8,1)
    w5 (8,1)   b5 (1,1)
    o_ref : (1, tile)          lane-dense sigmoid output (batch on lane axis)
    """
    # Hoist the tiny weights/biases out of the sub-chunk loop (loaded once per
    # grid step).  Layers 3/4 use pre-transposed weights so the batch lives on
    # the lane axis: full-lane MXU outputs and lane-dense ReLU / bias / store.
    w1 = w1_ref[...]
    b1 = b1_ref[...].astype(jnp.float32)
    w2 = w2_ref[...]
    b2 = b2_ref[...].astype(jnp.float32)
    w3t = w3_ref[...].T                      # (16, 32)
    b3 = b3_ref[...].astype(jnp.float32)     # (16, 1)
    w4t = w4_ref[...].T                      # (8, 16)
    b4 = b4_ref[...].astype(jnp.float32)     # (8, 1)
    w5 = w5_ref[...].astype(jnp.float32)     # (8, 1)
    b5 = b5_ref[...].astype(jnp.float32)     # (1, 1)

    def compute_chunk(off):
        # Layers 1-2: batch on the sublane axis.
        h = x_ref[pl.ds(off, sub_chunk), :].astype(w1.dtype)              # (sub, F)
        h = jnp.maximum(
            jnp.dot(h, w1, preferred_element_type=jnp.float32) + b1, 0.0)  # (sub, 64)
        h = jnp.maximum(
            jnp.dot(h.astype(w2.dtype), w2,
                    preferred_element_type=jnp.float32) + b2, 0.0)         # (sub, 32)
        # Move the batch onto the lane axis once; layers 3-5 are lane-dense.
        ht = h.T.astype(w3t.dtype)                                         # (32, sub)
        h3 = jnp.maximum(
            jnp.dot(w3t, ht, preferred_element_type=jnp.float32) + b3, 0.0)  # (16, sub)
        h4 = jnp.maximum(
            jnp.dot(w4t, h3.astype(w4t.dtype),
                    preferred_element_type=jnp.float32) + b4, 0.0)           # (8, sub)
        # Final Linear(8, 1) + Sigmoid: elementwise scale + sublane reduce.
        logits = jnp.sum(h4 * w5, axis=0, keepdims=True) + b5                # (1, sub)
        o_ref[:, pl.ds(off, sub_chunk)] = jax.nn.sigmoid(logits).astype(o_ref.dtype)

    if n_sub == 1:
        compute_chunk(0)
    else:
        def body(c, carry):
            compute_chunk(pl.multiple_of(c * sub_chunk, sub_chunk))
            return carry
        lax.fori_loop(0, n_sub, body, None, unroll=True)


def classification_model_forward(x, params, *, max_batch_tile=4096):
    """x: (B, n_features); params: 5 tuples (W, b) with W (in, out), b (1, out)
    (note: a raw PyTorch state_dict needs W.T and b.reshape(1, -1)).

    Returns sigmoid probabilities of shape (B, 1) in float32.
    """
    B, F = x.shape
    (w1, b1), (w2, b2), (w3, b3), (w4, b4), (w5, b5) = params
    x_itemsize = jnp.dtype(x.dtype).itemsize
    w_itemsize = jnp.dtype(w1.dtype).itemsize

    # ---- device-aware policy ----------------------------------------------
    kind = _device_kind()
    dual_tc = ("v7" in kind) or ("7x" in kind)
    # v7x: only 64 MiB VMEM per TensorCore -> leave headroom; v5e/v6e: 128 MiB.
    vmem_limit = (48 << 20) if dual_tc else (64 << 20)

    # Sub-32-bit x packs multiple rows per sublane -> bigger row multiple.
    sub_mult = 8 * max(1, 4 // x_itemsize)          # f32:8, bf16:16, int8:32

    # ---- VMEM-aware tile cap ------------------------------------------------
    # x and out blocks are double-buffered by BlockSpec; weights stay resident.
    weight_bytes = 2 * w_itemsize * (F * 64 + 64 * 32 + 32 * 16 + 16 * 8 + 8
                                     + 64 + 32 + 16 + 8 + 1)
    slack = 8 << 20
    bytes_per_row = 2 * F * x_itemsize + 2 * 4
    tile_cap = max(sub_mult, (vmem_limit - weight_bytes - slack) // bytes_per_row)
    tile_cap = min(tile_cap, max_batch_tile)
    tile_cap = max(sub_mult, (tile_cap // sub_mult) * sub_mult)

    if dual_tc and B > sub_mult:
        # Even number of grid steps (>=2, ideally 4) so both v7x TensorCores
        # get work under dimension_semantics=("parallel",).
        target_steps = 4 if B >= 4 * _SUB_CHUNK else 2
        tile = min(tile_cap, _round_up(_cdiv(B, target_steps), sub_mult))
    else:
        # Single-TC chips: the grid is a sequential loop -> no artificial split.
        tile = min(tile_cap, _round_up(max(B, 1), sub_mult))

    if tile > _SUB_CHUNK:
        tile = _round_up(tile, _SUB_CHUNK)   # in-kernel sub-chunk loop stays exact
        sub_chunk = _SUB_CHUNK
    else:
        sub_chunk = tile
    n_sub = tile // sub_chunk
    num_tiles = _cdiv(B, tile)
    # No jnp.pad: the last grid step is a partial block (DMA is bounded by the
    # array); its garbage tail rows are computed and sliced off below.

    # Bias orientation for the lane-dense layers (host-side reshape, free).
    b1r, b2r = b1.reshape(1, -1), b2.reshape(1, -1)
    b3c, b4c = b3.reshape(-1, 1), b4.reshape(-1, 1)
    w5c, b5c = w5.reshape(-1, 1), b5.reshape(1, 1)

    def full_spec(arr):
        # Constant block index -> fetched once, resident in VMEM for all steps.
        return pl.BlockSpec(arr.shape, lambda i: (0, 0))

    args = [x]
    in_specs = [pl.BlockSpec((tile, F), lambda i: (i, 0))]
    for arr in (w1, b1r, w2, b2r, w3, b3c, w4, b4c, w5c, b5c):
        in_specs.append(full_spec(arr))
        args.append(arr)

    flops_per_row = 2 * (F * 64 + 64 * 32 + 32 * 16 + 16 * 8 + 8)
    cost = pl.CostEstimate(
        flops=B * flops_per_row,
        transcendentals=B,
        bytes_accessed=B * F * x_itemsize + num_tiles * tile * 4 + weight_bytes // 2,
    )

    out = pl.pallas_call(
        functools.partial(mlp_kernel, sub_chunk=sub_chunk, n_sub=n_sub),
        out_shape=jax.ShapeDtypeStruct((num_tiles, 1, tile), jnp.float32),
        grid_spec=pltpu.PrefetchScalarGridSpec(
            num_scalar_prefetch=0,
            grid=(num_tiles,),
            in_specs=in_specs,
            # Lane-dense output: each grid step writes one full (1, tile) row.
            out_specs=pl.BlockSpec((None, 1, tile), lambda i: (i, 0, 0)),
        ),
        compiler_params=pltpu.CompilerParams(
            dimension_semantics=("parallel",),
            vmem_limit_bytes=vmem_limit),
        cost_estimate=cost,
    )(*args)

    return out.reshape(num_tiles * tile)[:B].reshape(B, 1)


def init_params(key, n_features):
    """Deterministic PyTorch-style (Kaiming-uniform-ish) init for the 5 Linear layers."""
    dims = [n_features, 64, 32, 16, 8, 1]
    params = []
    for i in range(5):
        fan_in, fan_out = dims[i], dims[i + 1]
        key, kw, kb = jax.random.split(key, 3)
        bound = 1.0 / jnp.sqrt(jnp.float32(fan_in))
        W = jax.random.uniform(kw, (fan_in, fan_out), jnp.float32, -bound, bound)
        b = jax.random.uniform(kb, (1, fan_out), jnp.float32, -bound, bound)
        params.append((W, b))
    return params


if __name__ == "__main__":
    n_features = 32
    batch = 500          # not a tile multiple -> exercises the partial last block

    key = jax.random.PRNGKey(0)
    key, kx = jax.random.split(key)
    x = jax.random.normal(kx, (batch, n_features), dtype=jnp.float32)
    params = init_params(key, n_features)

    out = classification_model_forward(x, params)
    out = jax.block_until_ready(out)

    # Pure-JAX reference for sanity checking.
    h = x
    for idx, (W, b) in enumerate(params):
        h = h @ W + b
        if idx < 4:
            h = jnp.maximum(h, 0.0)
    ref = jax.nn.sigmoid(h)

    assert out.shape == (batch, 1)
    assert jnp.allclose(out, ref, atol=2e-5, rtol=1e-5)
    print("KERNEL_OK")
</pallas_src>

<mosaic_0001>
module attributes {stable_mosaic.version = 11 : i64} {
  func.func @mlp_kernel(%arg0: i32, %arg1: memref<512x32xf32, #tpu.memory_space<vmem>>, %arg2: memref<32x64xf32, #tpu.memory_space<vmem>>, %arg3: memref<1x64xf32, #tpu.memory_space<vmem>>, %arg4: memref<64x32xf32, #tpu.memory_space<vmem>>, %arg5: memref<1x32xf32, #tpu.memory_space<vmem>>, %arg6: memref<32x16xf32, #tpu.memory_space<vmem>>, %arg7: memref<16x1xf32, #tpu.memory_space<vmem>>, %arg8: memref<16x8xf32, #tpu.memory_space<vmem>>, %arg9: memref<8x1xf32, #tpu.memory_space<vmem>>, %arg10: memref<8x1xf32, #tpu.memory_space<vmem>>, %arg11: memref<1x1xf32, #tpu.memory_space<vmem>>, %arg12: memref<1x1x512xf32, #tpu.memory_space<vmem>>) attributes {dimension_semantics = [#tpu.dimension_semantics<parallel>], iteration_bounds = array<i64: 1>, scalar_prefetch = 0 : i64, scratch_operands = 0 : i64, tpu.core_type = #tpu.core_type<tc>, window_params = [{transform_indices = @transform_0, window_bounds = array<i64: 512, 32>}, {pipeline_mode = #tpu.pipeline_mode<synchronous>, transform_indices = @transform_1, window_bounds = array<i64: 32, 64>}, {pipeline_mode = #tpu.pipeline_mode<synchronous>, transform_indices = @transform_2, window_bounds = array<i64: 1, 64>}, {pipeline_mode = #tpu.pipeline_mode<synchronous>, transform_indices = @transform_3, window_bounds = array<i64: 64, 32>}, {pipeline_mode = #tpu.pipeline_mode<synchronous>, transform_indices = @transform_4, window_bounds = array<i64: 1, 32>}, {pipeline_mode = #tpu.pipeline_mode<synchronous>, transform_indices = @transform_5, window_bounds = array<i64: 32, 16>}, {pipeline_mode = #tpu.pipeline_mode<synchronous>, transform_indices = @transform_6, window_bounds = array<i64: 16, 1>}, {pipeline_mode = #tpu.pipeline_mode<synchronous>, transform_indices = @transform_7, window_bounds = array<i64: 16, 8>}, {pipeline_mode = #tpu.pipeline_mode<synchronous>, transform_indices = @transform_8, window_bounds = array<i64: 8, 1>}, {pipeline_mode = #tpu.pipeline_mode<synchronous>, transform_indices = @transform_9, window_bounds = array<i64: 8, 1>}, {pipeline_mode = #tpu.pipeline_mode<synchronous>, transform_indices = @transform_10, window_bounds = array<i64: 1, 1>}, {transform_indices = @transform_11, window_bounds = array<i64: 1, 1, 512>}]} {
    %c0 = arith.constant 0 : index
    %c0_0 = arith.constant 0 : index
    %0 = vector.load %arg2[%c0, %c0_0] : memref<32x64xf32, #tpu.memory_space<vmem>>, vector<32x64xf32>
    %c0_1 = arith.constant 0 : index
    %c0_2 = arith.constant 0 : index
    %1 = vector.load %arg3[%c0_1, %c0_2] : memref<1x64xf32, #tpu.memory_space<vmem>>, vector<1x64xf32>
    %c0_3 = arith.constant 0 : index
    %c0_4 = arith.constant 0 : index
    %2 = vector.load %arg4[%c0_3, %c0_4] : memref<64x32xf32, #tpu.memory_space<vmem>>, vector<64x32xf32>
    %c0_5 = arith.constant 0 : index
    %c0_6 = arith.constant 0 : index
    %3 = vector.load %arg5[%c0_5, %c0_6] : memref<1x32xf32, #tpu.memory_space<vmem>>, vector<1x32xf32>
    %c0_7 = arith.constant 0 : index
    %c0_8 = arith.constant 0 : index
    %4 = vector.load %arg6[%c0_7, %c0_8] : memref<32x16xf32, #tpu.memory_space<vmem>>, vector<32x16xf32>
    %5 = tpu.transpose %4, [1, 0] : vector<32x16xf32> -> vector<16x32xf32>
    %c0_9 = arith.constant 0 : index
    %c0_10 = arith.constant 0 : index
    %6 = vector.load %arg7[%c0_9, %c0_10] : memref<16x1xf32, #tpu.memory_space<vmem>>, vector<16x1xf32>
    %c0_11 = arith.constant 0 : index
    %c0_12 = arith.constant 0 : index
    %7 = vector.load %arg8[%c0_11, %c0_12] : memref<16x8xf32, #tpu.memory_space<vmem>>, vector<16x8xf32>
    %8 = tpu.transpose %7, [1, 0] : vector<16x8xf32> -> vector<8x16xf32>
    %c0_13 = arith.constant 0 : index
    %c0_14 = arith.constant 0 : index
    %9 = vector.load %arg9[%c0_13, %c0_14] : memref<8x1xf32, #tpu.memory_space<vmem>>, vector<8x1xf32>
    %c0_15 = arith.constant 0 : index
    %c0_16 = arith.constant 0 : index
    %10 = vector.load %arg10[%c0_15, %c0_16] : memref<8x1xf32, #tpu.memory_space<vmem>>, vector<8x1xf32>
    %c0_17 = arith.constant 0 : index
    %c0_18 = arith.constant 0 : index
    %11 = vector.load %arg11[%c0_17, %c0_18] : memref<1x1xf32, #tpu.memory_space<vmem>>, vector<1x1xf32>
    %c0_i32 = arith.constant 0 : i32
    %c256_i32 = arith.constant 256 : i32
    %12 = arith.muli %c0_i32, %c256_i32 : i32
    %13 = tpu.assume_multiple %12, 256 : i32
    %14 = arith.index_cast %13 : i32 to index
    %c0_19 = arith.constant 0 : index
    %15 = vector.load %arg1[%14, %c0_19] : memref<512x32xf32, #tpu.memory_space<vmem>>, vector<256x32xf32>
    %cst = arith.constant dense<0.000000e+00> : vector<256x64xf32>
    %16 = tpu.matmul %15, %0, %cst {dimension_numbers = #tpu.dot_dimension_numbers<[1], [0], [0], [1], [0, 0, 1, 1], [], []>} : vector<256x32xf32>, vector<32x64xf32>, vector<256x64xf32> -> vector<256x64xf32>
    %17 = vector.broadcast %1 : vector<1x64xf32> to vector<256x64xf32>
    %18 = arith.addf %16, %17 : vector<256x64xf32>
    %cst_20 = arith.constant 0.000000e+00 : f32
    %19 = vector.broadcast %cst_20 : f32 to vector<256x64xf32>
    %20 = arith.maximumf %18, %19 : vector<256x64xf32>
    %cst_21 = arith.constant dense<0.000000e+00> : vector<256x32xf32>
    %21 = tpu.matmul %20, %2, %cst_21 {dimension_numbers = #tpu.dot_dimension_numbers<[1], [0], [0], [1], [0, 0, 1, 1], [], []>} : vector<256x64xf32>, vector<64x32xf32>, vector<256x32xf32> -> vector<256x32xf32>
    %22 = vector.broadcast %3 : vector<1x32xf32> to vector<256x32xf32>
    %23 = arith.addf %21, %22 : vector<256x32xf32>
    %cst_22 = arith.constant 0.000000e+00 : f32
    %24 = vector.broadcast %cst_22 : f32 to vector<256x32xf32>
    %25 = arith.maximumf %23, %24 : vector<256x32xf32>
    %26 = tpu.transpose %25, [1, 0] : vector<256x32xf32> -> vector<32x256xf32>
    %cst_23 = arith.constant dense<0.000000e+00> : vector<16x256xf32>
    %27 = tpu.matmul %5, %26, %cst_23 {dimension_numbers = #tpu.dot_dimension_numbers<[1], [0], [0], [1], [0, 0, 1, 1], [], []>} : vector<16x32xf32>, vector<32x256xf32>, vector<16x256xf32> -> vector<16x256xf32>
    %28 = vector.broadcast %6 : vector<16x1xf32> to vector<16x256xf32>
    %29 = arith.addf %27, %28 : vector<16x256xf32>
    %cst_24 = arith.constant 0.000000e+00 : f32
    %30 = vector.broadcast %cst_24 : f32 to vector<16x256xf32>
    %31 = arith.maximumf %29, %30 : vector<16x256xf32>
    %cst_25 = arith.constant dense<0.000000e+00> : vector<8x256xf32>
    %32 = tpu.matmul %8, %31, %cst_25 {dimension_numbers = #tpu.dot_dimension_numbers<[1], [0], [0], [1], [0, 0, 1, 1], [], []>} : vector<8x16xf32>, vector<16x256xf32>, vector<8x256xf32> -> vector<8x256xf32>
    %33 = vector.broadcast %9 : vector<8x1xf32> to vector<8x256xf32>
    %34 = arith.addf %32, %33 : vector<8x256xf32>
    %cst_26 = arith.constant 0.000000e+00 : f32
    %35 = vector.broadcast %cst_26 : f32 to vector<8x256xf32>
    %36 = arith.maximumf %34, %35 : vector<8x256xf32>
    %37 = vector.broadcast %10 : vector<8x1xf32> to vector<8x256xf32>
    %38 = arith.mulf %36, %37 : vector<8x256xf32>
    %cst_27 = arith.constant dense<0.000000e+00> : vector<256xf32>
    %39 = vector.multi_reduction <add>, %38, %cst_27 [0] : vector<8x256xf32> to vector<256xf32>
    %40 = vector.shape_cast %39 : vector<256xf32> to vector<1x256xf32>
    %41 = vector.broadcast %11 : vector<1x1xf32> to vector<1x256xf32>
    %42 = arith.addf %40, %41 : vector<1x256xf32>
    %43 = arith.negf %42 : vector<1x256xf32>
    %44 = math.exp %43 : vector<1x256xf32>
    %cst_28 = arith.constant 1.000000e+00 : f32
    %45 = vector.broadcast %cst_28 : f32 to vector<1x256xf32>
    %46 = arith.addf %45, %44 : vector<1x256xf32>
    %47 = arith.divf %45, %46 : vector<1x256xf32>
    %c0_29 = arith.constant 0 : index
    %c0_30 = arith.constant 0 : index
    %48 = arith.index_cast %13 : i32 to index
    %49 = vector.load %arg12[%c0_29, %c0_30, %48] : memref<1x1x512xf32, #tpu.memory_space<vmem>>, vector<1x1x256xf32>
    %50 = vector.shape_cast %49 : vector<1x1x256xf32> to vector<1x256xf32>
    %51 = vector.shape_cast %47 : vector<1x256xf32> to vector<1x1x256xf32>
    tpu.vector_store %arg12[%c0_29, %c0_30, %48], %51 {strides = array<i32>} : memref<1x1x512xf32, #tpu.memory_space<vmem>>, vector<1x1x256xf32>,
    %c1_i32 = arith.constant 1 : i32
    %c256_i32_31 = arith.constant 256 : i32
    %52 = arith.muli %c1_i32, %c256_i32_31 : i32
    %53 = tpu.assume_multiple %52, 256 : i32
    %54 = arith.index_cast %53 : i32 to index
    %c0_32 = arith.constant 0 : index
    %55 = vector.load %arg1[%54, %c0_32] : memref<512x32xf32, #tpu.memory_space<vmem>>, vector<256x32xf32>
    %cst_33 = arith.constant dense<0.000000e+00> : vector<256x64xf32>
    %56 = tpu.matmul %55, %0, %cst_33 {dimension_numbers = #tpu.dot_dimension_numbers<[1], [0], [0], [1], [0, 0, 1, 1], [], []>} : vector<256x32xf32>, vector<32x64xf32>, vector<256x64xf32> -> vector<256x64xf32>
    %57 = vector.broadcast %1 : vector<1x64xf32> to vector<256x64xf32>
    %58 = arith.addf %56, %57 : vector<256x64xf32>
    %cst_34 = arith.constant 0.000000e+00 : f32
    %59 = vector.broadcast %cst_34 : f32 to vector<256x64xf32>
    %60 = arith.maximumf %58, %59 : vector<256x64xf32>
    %cst_35 = arith.constant dense<0.000000e+00> : vector<256x32xf32>
    %61 = tpu.matmul %60, %2, %cst_35 {dimension_numbers = #tpu.dot_dimension_numbers<[1], [0], [0], [1], [0, 0, 1, 1], [], []>} : vector<256x64xf32>, vector<64x32xf32>, vector<256x32xf32> -> vector<256x32xf32>
    %62 = vector.broadcast %3 : vector<1x32xf32> to vector<256x32xf32>
    %63 = arith.addf %61, %62 : vector<256x32xf32>
    %cst_36 = arith.constant 0.000000e+00 : f32
    %64 = vector.broadcast %cst_36 : f32 to vector<256x32xf32>
    %65 = arith.maximumf %63, %64 : vector<256x32xf32>
    %66 = tpu.transpose %65, [1, 0] : vector<256x32xf32> -> vector<32x256xf32>
    %cst_37 = arith.constant dense<0.000000e+00> : vector<16x256xf32>
    %67 = tpu.matmul %5, %66, %cst_37 {dimension_numbers = #tpu.dot_dimension_numbers<[1], [0], [0], [1], [0, 0, 1, 1], [], []>} : vector<16x32xf32>, vector<32x256xf32>, vector<16x256xf32> -> vector<16x256xf32>
    %68 = vector.broadcast %6 : vector<16x1xf32> to vector<16x256xf32>
    %69 = arith.addf %67, %68 : vector<16x256xf32>
    %cst_38 = arith.constant 0.000000e+00 : f32
    %70 = vector.broadcast %cst_38 : f32 to vector<16x256xf32>
    %71 = arith.maximumf %69, %70 : vector<16x256xf32>
    %cst_39 = arith.constant dense<0.000000e+00> : vector<8x256xf32>
    %72 = tpu.matmul %8, %71, %cst_39 {dimension_numbers = #tpu.dot_dimension_numbers<[1], [0], [0], [1], [0, 0, 1, 1], [], []>} : vector<8x16xf32>, vector<16x256xf32>, vector<8x256xf32> -> vector<8x256xf32>
    %73 = vector.broadcast %9 : vector<8x1xf32> to vector<8x256xf32>
    %74 = arith.addf %72, %73 : vector<8x256xf32>
    %cst_40 = arith.constant 0.000000e+00 : f32
    %75 = vector.broadcast %cst_40 : f32 to vector<8x256xf32>
    %76 = arith.maximumf %74, %75 : vector<8x256xf32>
    %77 = vector.broadcast %10 : vector<8x1xf32> to vector<8x256xf32>
    %78 = arith.mulf %76, %77 : vector<8x256xf32>
    %cst_41 = arith.constant dense<0.000000e+00> : vector<256xf32>
    %79 = vector.multi_reduction <add>, %78, %cst_41 [0] : vector<8x256xf32> to vector<256xf32>
    %80 = vector.shape_cast %79 : vector<256xf32> to vector<1x256xf32>
    %81 = vector.broadcast %11 : vector<1x1xf32> to vector<1x256xf32>
    %82 = arith.addf %80, %81 : vector<1x256xf32>
    %83 = arith.negf %82 : vector<1x256xf32>
    %84 = math.exp %83 : vector<1x256xf32>
    %cst_42 = arith.constant 1.000000e+00 : f32
    %85 = vector.broadcast %cst_42 : f32 to vector<1x256xf32>
    %86 = arith.addf %85, %84 : vector<1x256xf32>
    %87 = arith.divf %85, %86 : vector<1x256xf32>
    %c0_43 = arith.constant 0 : index
    %c0_44 = arith.constant 0 : index
    %88 = arith.index_cast %53 : i32 to index
    %89 = vector.load %arg12[%c0_43, %c0_44, %88] : memref<1x1x512xf32, #tpu.memory_space<vmem>>, vector<1x1x256xf32>
    %90 = vector.shape_cast %89 : vector<1x1x256xf32> to vector<1x256xf32>
    %91 = vector.shape_cast %87 : vector<1x256xf32> to vector<1x1x256xf32>
    tpu.vector_store %arg12[%c0_43, %c0_44, %88], %91 {strides = array<i32>} : memref<1x1x512xf32, #tpu.memory_space<vmem>>, vector<1x1x256xf32>,
    %c2_i32 = arith.constant 2 : i32
    return
  }
  func.func @transform_0(%arg0: i32) -> (i32, i32) {
    %c0_i32 = arith.constant 0 : i32
    %c0_i32_0 = arith.constant 0 : i32
    return %arg0, %c0_i32 : i32, i32
  }
  func.func @transform_1(%arg0: i32) -> (i32, i32) {
    %c0_i32 = arith.constant 0 : i32
    %c0_i32_0 = arith.constant 0 : i32
    %c0_i32_1 = arith.constant 0 : i32
    return %c0_i32, %c0_i32_0 : i32, i32
  }
  func.func @transform_2(%arg0: i32) -> (i32, i32) {
    %c0_i32 = arith.constant 0 : i32
    %c0_i32_0 = arith.constant 0 : i32
    %c0_i32_1 = arith.constant 0 : i32
    return %c0_i32, %c0_i32_0 : i32, i32
  }
  func.func @transform_3(%arg0: i32) -> (i32, i32) {
    %c0_i32 = arith.constant 0 : i32
    %c0_i32_0 = arith.constant 0 : i32
    %c0_i32_1 = arith.constant 0 : i32
    return %c0_i32, %c0_i32_0 : i32, i32
  }
  func.func @transform_4(%arg0: i32) -> (i32, i32) {
    %c0_i32 = arith.constant 0 : i32
    %c0_i32_0 = arith.constant 0 : i32
    %c0_i32_1 = arith.constant 0 : i32
    return %c0_i32, %c0_i32_0 : i32, i32
  }
  func.func @transform_5(%arg0: i32) -> (i32, i32) {
    %c0_i32 = arith.constant 0 : i32
    %c0_i32_0 = arith.constant 0 : i32
    %c0_i32_1 = arith.constant 0 : i32
    return %c0_i32, %c0_i32_0 : i32, i32
  }
  func.func @transform_6(%arg0: i32) -> (i32, i32) {
    %c0_i32 = arith.constant 0 : i32
    %c0_i32_0 = arith.constant 0 : i32
    %c0_i32_1 = arith.constant 0 : i32
    return %c0_i32, %c0_i32_0 : i32, i32
  }
  func.func @transform_7(%arg0: i32) -> (i32, i32) {
    %c0_i32 = arith.constant 0 : i32
    %c0_i32_0 = arith.constant 0 : i32
    %c0_i32_1 = arith.constant 0 : i32
    return %c0_i32, %c0_i32_0 : i32, i32
  }
  func.func @transform_8(%arg0: i32) -> (i32, i32) {
    %c0_i32 = arith.constant 0 : i32
    %c0_i32_0 = arith.constant 0 : i32
    %c0_i32_1 = arith.constant 0 : i32
    return %c0_i32, %c0_i32_0 : i32, i32
  }
  func.func @transform_9(%arg0: i32) -> (i32, i32) {
    %c0_i32 = arith.constant 0 : i32
    %c0_i32_0 = arith.constant 0 : i32
    %c0_i32_1 = arith.constant 0 : i32
    return %c0_i32, %c0_i32_0 : i32, i32
  }
  func.func @transform_10(%arg0: i32) -> (i32, i32) {
    %c0_i32 = arith.constant 0 : i32
    %c0_i32_0 = arith.constant 0 : i32
    %c0_i32_1 = arith.constant 0 : i32
    return %c0_i32, %c0_i32_0 : i32, i32
  }
  func.func @transform_11(%arg0: i32) -> (i32, i32, i32) {
    %c0_i32 = arith.constant 0 : i32
    %c0_i32_0 = arith.constant 0 : i32
    %c0_i32_1 = arith.constant 0 : i32
    return %arg0, %c0_i32, %c0_i32_0 : i32, i32, i32
  }
}

</mosaic_0001>

<llo_original>
// kernel: tpu_custom_call.1
$region0: #{tpu_custom_call.1}
  #allocation0 [shape = 'u32[]', space=smem, size = 0x4, offset = 0x4, fixed_abs, tag = 'smem constant byte address 0x4 - core index']
  #allocation1 [shape = 'u32[144,128]{1,0:T(1,128)}', space=vmem, size = 0x12000, scoped, tag = 'internal scratch']
  #allocation2 [shape = 'f32[1,1]{1,0:T(1,128)S(1)}', space=vmem, size = 0x200, scoped, tag = 'scoped memory for tpu_custom_call.1']
  %s0 = inlined_call_operand.vmem [shape: f32[500,32], index: 0, kind: input, shape index: {}]
  %s1 = inlined_call_operand.vmem [shape: f32[32,64], index: 1, kind: input, shape index: {}]
  %s2 = inlined_call_operand.vmem [shape: f32[1,64], index: 2, kind: input, shape index: {}]
  %s3 = inlined_call_operand.vmem [shape: f32[64,32], index: 3, kind: input, shape index: {}]
  %s4 = inlined_call_operand.vmem [shape: f32[1,32], index: 4, kind: input, shape index: {}]
  %s5 = inlined_call_operand.vmem [shape: f32[32,16], index: 5, kind: input, shape index: {}]
  %s6 = inlined_call_operand.vmem [shape: f32[16,1], index: 6, kind: input, shape index: {}]
  %s7 = inlined_call_operand.vmem [shape: f32[16,8], index: 7, kind: input, shape index: {}]
  %s8 = inlined_call_operand.vmem [shape: f32[8,1], index: 8, kind: input, shape index: {}]
  %s9 = inlined_call_operand.vmem [shape: f32[8,1], index: 9, kind: input, shape index: {}]
  %s10 = inlined_call_operand.<no memory space> [shape: f32[1,1], index: 10, kind: input, shape index: {}]
  %s11 = inlined_call_operand.hbm [shape: f32[1,1,512], index: 11, kind: output, shape index: {}]
  %s12 = sld [smem:[#allocation0]]
  $region54: #{tpu_custom_call.1} parent=0
    _
  %s14 = ssub.s32 1, %s12
  %s15 = scalar_select 0, %s14, %s12
  %v16 = vstv %s10
  %17 = vst [vmem:[#allocation2] sm:$0x1] %v16
  $region1: #{tpu_custom_call.1} parent=0
    #allocation3 [shape = 'u8[2048]{0}', space=vmem, size = 0x800, scoped, tag = 'output window, operand 0, single buffered']
    #allocation4 [shape = 's32[1]{0}', space=sflag, size = 0x4, scoped, tag = 'scoped memory for tpu_custom_call.1']
    %18 = vsyncpa [#allocation4], 0
    // Predicated region
    $region2: #{tpu_custom_call.1} parent=1 // pred_check
      _
    $region3: #{tpu_custom_call.1} parent=1 // pred_check_branch
      %20 = sbr.rel (0) target = $region5
    $region4: #{tpu_custom_call.1} parent=1 // pred_region
      _
    $region5: #{tpu_custom_call.1} parent=1 // pred_fallthru
      _
    // Predicated region
    $region6: #{tpu_custom_call.1} parent=1 // pred_check
      _
    $region7: #{tpu_custom_call.1} parent=1 // pred_check_branch
      %22 = sbr.rel (0) target = $region9
    $region8: #{tpu_custom_call.1} parent=1 // pred_region
      _
    $region9: #{tpu_custom_call.1} parent=1 // pred_fallthru
      _
    // Predicated region
    $region10: #{tpu_custom_call.1} parent=1 // pred_check
      _
    $region11: #{tpu_custom_call.1} parent=1 // pred_check_branch
      %24 = sbr.rel (0) target = $region13
    $region12: #{tpu_custom_call.1} parent=1 // pred_region
      _
    $region13: #{tpu_custom_call.1} parent=1 // pred_fallthru
      _
    // Predicated region
    $region14: #{tpu_custom_call.1} parent=1 // pred_check
      _
    $region15: #{tpu_custom_call.1} parent=1 // pred_check_branch
      %26 = sbr.rel (0) target = $region17
    $region16: #{tpu_custom_call.1} parent=1 // pred_region
      _
    $region17: #{tpu_custom_call.1} parent=1 // pred_fallthru
      _
    // Predicated region
    $region18: #{tpu_custom_call.1} parent=1 // pred_check
      _
    $region19: #{tpu_custom_call.1} parent=1 // pred_check_branch
      %28 = sbr.rel (0) target = $region21
    $region20: #{tpu_custom_call.1} parent=1 // pred_region
      _
    $region21: #{tpu_custom_call.1} parent=1 // pred_fallthru
      _
    // Predicated region
    $region22: #{tpu_custom_call.1} parent=1 // pred_check
      _
    $region23: #{tpu_custom_call.1} parent=1 // pred_check_branch
      %30 = sbr.rel (0) target = $region25
    $region24: #{tpu_custom_call.1} parent=1 // pred_region
      _
    $region25: #{tpu_custom_call.1} parent=1 // pred_fallthru
      _
    // Predicated region
    $region26: #{tpu_custom_call.1} parent=1 // pred_check
      _
    $region27: #{tpu_custom_call.1} parent=1 // pred_check_branch
      %32 = sbr.rel (0) target = $region29
    $region28: #{tpu_custom_call.1} parent=1 // pred_region
      _
    $region29: #{tpu_custom_call.1} parent=1 // pred_fallthru
      _
    // Predicated region
    $region30: #{tpu_custom_call.1} parent=1 // pred_check
      _
    $region31: #{tpu_custom_call.1} parent=1 // pred_check_branch
      %34 = sbr.rel (0) target = $region33
    $region32: #{tpu_custom_call.1} parent=1 // pred_region
      _
    $region33: #{tpu_custom_call.1} parent=1 // pred_fallthru
      _
    // Predicated region
    $region34: #{tpu_custom_call.1} parent=1 // pred_check
      _
    $region35: #{tpu_custom_call.1} parent=1 // pred_check_branch
      %36 = sbr.rel (0) target = $region37
    $region36: #{tpu_custom_call.1} parent=1 // pred_region
      _
    $region37: #{tpu_custom_call.1} parent=1 // pred_fallthru
      _
    // Predicated region
    $region38: #{tpu_custom_call.1} parent=1 // pred_check
      _
    $region39: #{tpu_custom_call.1} parent=1 // pred_check_branch
      %38 = sbr.rel (0) target = $region41
    $region40: #{tpu_custom_call.1} parent=1 // pred_region
      _
    $region41: #{tpu_custom_call.1} parent=1 // pred_fallthru
      _
    // Predicated region
    $region42: #{tpu_custom_call.1} parent=1 // pred_check
      _
    $region43: #{tpu_custom_call.1} parent=1 // pred_check_branch
      %40 = sbr.rel (0) target = $region45
    $region44: #{tpu_custom_call.1} parent=1 // pred_region
      _
    $region45: #{tpu_custom_call.1} parent=1 // pred_fallthru
      _
    %v41 = vld [vmem:[%s1] sm:$0xff]
    %v42 = vld [vmem:[%s1 + $0x8] sm:$0xff]
    %v43 = vld [vmem:[%s1 + $0x10] sm:$0xff]
    %v44 = vld [vmem:[%s1 + $0x18] sm:$0xff]
    %v45 = vld [vmem:[%s2] sm:$0x1]
    %v46 = vld [vmem:[%s3] sm:$0xff]
    %v47 = vld [vmem:[%s3 + $0x8] sm:$0xff]
    %v48 = vld [vmem:[%s3 + $0x10] sm:$0xff]
    %v49 = vld [vmem:[%s3 + $0x18] sm:$0xff]
    %v50 = vld [vmem:[%s3 + $0x20] sm:$0xff]
    %v51 = vld [vmem:[%s3 + $0x28] sm:$0xff]
    %v52 = vld [vmem:[%s3 + $0x30] sm:$0xff]
    %v53 = vld [vmem:[%s3 + $0x38] sm:$0xff]
    %v54 = vld [vmem:[%s4] sm:$0x1]
    %v55 = vld [vmem:[%s5] sm:$0xff]
    %v56 = vld [vmem:[%s5 + $0x8] sm:$0xff]
    %v57 = vld [vmem:[%s5 + $0x10] sm:$0xff]
    %v58 = vld [vmem:[%s5 + $0x18] sm:$0xff]
    %59 = vxpose.xlu0.b32.start [1/16] %v55, 128
    %60 = vxpose.xlu0.b32.cont [2/16] %v56, 128
    %61 = vxpose.xlu0.b32.cont [3/16] %v57, 128
    %62 = vxpose.xlu0.b32.cont [4/16] %v58, 128
    %63 = vxpose.xlu0.b32.cont [5/16] 0.0, 128
    %64 = vxpose.xlu0.b32.cont [6/16] 0.0, 128
    %65 = vxpose.xlu0.b32.cont [7/16] 0.0, 128
    %66 = vxpose.xlu0.b32.cont [8/16] 0.0, 128
    %67 = vxpose.xlu0.b32.cont [9/16] 0.0, 128
    %68 = vxpose.xlu0.b32.cont [10/16] 0.0, 128
    %69 = vxpose.xlu0.b32.cont [11/16] 0.0, 128
    %70 = vxpose.xlu0.b32.cont [12/16] 0.0, 128
    %71 = vxpose.xlu0.b32.cont [13/16] 0.0, 128
    %72 = vxpose.xlu0.b32.cont [14/16] 0.0, 128
    %73 = vxpose.xlu0.b32.cont [15/16] 0.0, 128
    %74 = vxpose.xlu0.b32.end [16/16] 0.0, 128
    %v75 = vpop.trf.xlu0
    %v76 = vpop.trf.xlu0
    %v77 = vpop.trf.xlu0
    %v78 = vpop.trf.xlu0
    %v79 = vpop.trf.xlu0
    %v80 = vpop.trf.xlu0
    %v81 = vpop.trf.xlu0
    %v82 = vpop.trf.xlu0
    %v83 = vpop.trf.xlu0
    %v84 = vpop.trf.xlu0
    %v85 = vpop.trf.xlu0
    %v86 = vpop.trf.xlu0
    %v87 = vpop.trf.xlu0
    %v88 = vpop.trf.xlu0
    %v89 = vpop.trf.xlu0
    %v90 = vpop.trf.xlu0
    %v91 = vld [vmem:[%s6] sm:$0xff]
    %v92 = vld [vmem:[%s6 + $0x8] sm:$0xff]
    %v93 = vld [vmem:[%s7] sm:$0xff]
    %v94 = vld [vmem:[%s7 + $0x8] sm:$0xff]
    %95 = vxpose.xlu0.b32.start [1/16] %v93, 128
    %96 = vxpose.xlu0.b32.cont [2/16] %v94, 128
    %97 = vxpose.xlu0.b32.cont [3/16] 0.0, 128
    %98 = vxpose.xlu0.b32.cont [4/16] 0.0, 128
    %99 = vxpose.xlu0.b32.cont [5/16] 0.0, 128
    %100 = vxpose.xlu0.b32.cont [6/16] 0.0, 128
    %101 = vxpose.xlu0.b32.cont [7/16] 0.0, 128
    %102 = vxpose.xlu0.b32.cont [8/16] 0.0, 128
    %103 = vxpose.xlu0.b32.cont [9/16] 0.0, 128
    %104 = vxpose.xlu0.b32.cont [10/16] 0.0, 128
    %105 = vxpose.xlu0.b32.cont [11/16] 0.0, 128
    %106 = vxpose.xlu0.b32.cont [12/16] 0.0, 128
    %107 = vxpose.xlu0.b32.cont [13/16] 0.0, 128
    %108 = vxpose.xlu0.b32.cont [14/16] 0.0, 128
    %109 = vxpose.xlu0.b32.cont [15/16] 0.0, 128
    %110 = vxpose.xlu0.b32.end [16/16] 0.0, 128
    %v111 = vpop.trf.xlu0
    %v112 = vpop.trf.xlu0
    %v113 = vpop.trf.xlu0
    %v114 = vpop.trf.xlu0
    %v115 = vpop.trf.xlu0
    %v116 = vpop.trf.xlu0
    %v117 = vpop.trf.xlu0
    %v118 = vpop.trf.xlu0
    %v119 = vpop.trf.xlu0
    %v120 = vpop.trf.xlu0
    %v121 = vpop.trf.xlu0
    %v122 = vpop.trf.xlu0
    %v123 = vpop.trf.xlu0
    %v124 = vpop.trf.xlu0
    %v125 = vpop.trf.xlu0
    %v126 = vpop.trf.xlu0
    %v127 = vld [vmem:[%s8] sm:$0xff]
    %v128 = vld [vmem:[%s9] sm:$0xff]
    %v129 = vld [vmem:[#allocation2] sm:$0x1]
    %v130 = vld [vmem:[%s0] sm:$0xff]
    %v131 = vld [vmem:[%s0 + $0x8] sm:$0xff]
    %v132 = vld [vmem:[%s0 + $0x10] sm:$0xff]
    %v133 = vld [vmem:[%s0 + $0x18] sm:$0xff]
    %v134 = vld [vmem:[%s0 + $0x20] sm:$0xff]
    %v135 = vld [vmem:[%s0 + $0x28] sm:$0xff]
    %v136 = vld [vmem:[%s0 + $0x30] sm:$0xff]
    %v137 = vld [vmem:[%s0 + $0x38] sm:$0xff]
    %v138 = vld [vmem:[%s0 + $0x40] sm:$0xff]
    %v139 = vld [vmem:[%s0 + $0x48] sm:$0xff]
    %v140 = vld [vmem:[%s0 + $0x50] sm:$0xff]
    %v141 = vld [vmem:[%s0 + $0x58] sm:$0xff]
    %v142 = vld [vmem:[%s0 + $0x60] sm:$0xff]
    %v143 = vld [vmem:[%s0 + $0x68] sm:$0xff]
    %v144 = vld [vmem:[%s0 + $0x70] sm:$0xff]
    %v145 = vld [vmem:[%s0 + $0x78] sm:$0xff]
    %v146 = vld [vmem:[%s0 + $0x80] sm:$0xff]
    %v147 = vld [vmem:[%s0 + $0x88] sm:$0xff]
    %v148 = vld [vmem:[%s0 + $0x90] sm:$0xff]
    %v149 = vld [vmem:[%s0 + $0x98] sm:$0xff]
    %v150 = vld [vmem:[%s0 + $0xa0] sm:$0xff]
    %v151 = vld [vmem:[%s0 + $0xa8] sm:$0xff]
    %v152 = vld [vmem:[%s0 + $0xb0] sm:$0xff]
    %v153 = vld [vmem:[%s0 + $0xb8] sm:$0xff]
    %v154 = vld [vmem:[%s0 + $0xc0] sm:$0xff]
    %v155 = vld [vmem:[%s0 + $0xc8] sm:$0xff]
    %v156 = vld [vmem:[%s0 + $0xd0] sm:$0xff]
    %v157 = vld [vmem:[%s0 + $0xd8] sm:$0xff]
    %v158 = vld [vmem:[%s0 + $0xe0] sm:$0xff]
    %v159 = vld [vmem:[%s0 + $0xe8] sm:$0xff]
    %v160 = vld [vmem:[%s0 + $0xf0] sm:$0xff]
    %v161 = vld [vmem:[%s0 + $0xf8] sm:$0xff]
    %v163 = vlaneseq
    %v164 = vshrl.u32 %v163, 7
    %v165 = vsub.s32 0, %v164
    %v166 = vrot.slane %v45, %v165
    %vm168 = vcmask 261120
    %v170 = vsel %vm168, %v130, 0
    %v173 = vsel %vm168, %v131, 0
    %v176 = vsel %vm168, %v132, 0
    %v179 = vsel %vm168, %v133, 0
    %v182 = vsel %vm168, %v134, 0
    %v185 = vsel %vm168, %v135, 0
    %v188 = vsel %vm168, %v136, 0
    %v191 = vsel %vm168, %v137, 0
    %v194 = vsel %vm168, %v138, 0
    %v197 = vsel %vm168, %v139, 0
    %v200 = vsel %vm168, %v140, 0
    %v203 = vsel %vm168, %v141, 0
    %v206 = vsel %vm168, %v142, 0
    %v209 = vsel %vm168, %v143, 0
    %v212 = vsel %vm168, %v144, 0
    %v215 = vsel %vm168, %v145, 0
    %v218 = vsel %vm168, %v146, 0
    %v221 = vsel %vm168, %v147, 0
    %v224 = vsel %vm168, %v148, 0
    %v227 = vsel %vm168, %v149, 0
    %v230 = vsel %vm168, %v150, 0
    %v233 = vsel %vm168, %v151, 0
    %v236 = vsel %vm168, %v152, 0
    %v239 = vsel %vm168, %v153, 0
    %v242 = vsel %vm168, %v154, 0
    %v245 = vsel %vm168, %v155, 0
    %v248 = vsel %vm168, %v156, 0
    %v251 = vsel %vm168, %v157, 0
    %v254 = vsel %vm168, %v158, 0
    %v257 = vsel %vm168, %v159, 0
    %v260 = vsel %vm168, %v160, 0
    %v263 = vsel %vm168, %v161, 0
    %265 = vmatprep.subr.mxu0 0.0
    %266 = vmatpush1.msra.mxu0 0.0
    %267 = vmatprep.subr.mxu0 0.0
    %268 = vmatpush1.msra.mxu0 0.0
    %269 = vmatprep.subr.mxu0 0.0
    %270 = vmatpush1.msra.mxu0 0.0
    %271 = vmatprep.subr.mxu0 0.0
    %272 = vmatpush1.msra.mxu0 0.0
    %273 = vmatprep.subr.mxu0 0.0
    %274 = vmatpush1.msra.mxu0 0.0
    %275 = vmatprep.subr.mxu0 0.0
    %276 = vmatpush1.msra.mxu0 0.0
    %277 = vmatprep.subr.mxu0 0.0
    %278 = vmatpush1.msra.mxu0 0.0
    %279 = vmatprep.subr.mxu0 0.0
    %280 = vmatpush1.msra.mxu0 0.0
    %281 = vmatprep.subr.mxu0 0.0
    %282 = vmatpush1.msra.mxu0 0.0
    %283 = vmatprep.subr.mxu0 0.0
    %284 = vmatpush1.msra.mxu0 0.0
    %285 = vmatprep.subr.mxu0 0.0
    %286 = vmatpush1.msra.mxu0 0.0
    %287 = vmatprep.subr.mxu0 0.0
    %288 = vmatpush1.msra.mxu0 0.0
    %289 = vmatprep.subr.mxu0 0.0
    %290 = vmatpush1.msra.mxu0 %v44
    %291 = vmatprep.subr.mxu0 0.0
    %292 = vmatpush1.msra.mxu0 %v43
    %293 = vmatprep.subr.mxu0 0.0
    %294 = vmatpush1.msra.mxu0 %v42
    %295 = vmatprep.subr.mxu0 0.0
    %296 = vmatpush1.msra.mxu0 %v41
    %297 = vmatprep.subr.mxu0 0.0
    %298 = vmatpush2.msra.mxu0 0.0
    %299 = vmatprep.subr.mxu0 0.0
    %300 = vmatpush2.msra.mxu0 0.0
    %301 = vmatprep.subr.mxu0 0.0
    %302 = vmatpush2.msra.mxu0 0.0
    %303 = vmatprep.subr.mxu0 0.0
    %304 = vmatpush2.msra.mxu0 0.0
    %305 = vmatprep.subr.mxu0 0.0
    %306 = vmatpush2.msra.mxu0 0.0
    %307 = vmatprep.subr.mxu0 0.0
    %308 = vmatpush2.msra.mxu0 0.0
    %309 = vmatprep.subr.mxu0 0.0
    %310 = vmatpush2.msra.mxu0 0.0
    %311 = vmatprep.subr.mxu0 0.0
    %312 = vmatpush2.msra.mxu0 0.0
    %313 = vmatprep.subr.mxu0 0.0
    %314 = vmatpush2.msra.mxu0 0.0
    %315 = vmatprep.subr.mxu0 0.0
    %316 = vmatpush2.msra.mxu0 0.0
    %317 = vmatprep.subr.mxu0 0.0
    %318 = vmatpush2.msra.mxu0 0.0
    %319 = vmatprep.subr.mxu0 0.0
    %320 = vmatpush2.msra.mxu0 0.0
    %321 = vmatprep.subr.mxu0 0.0
    %322 = vmatpush2.msra.mxu0 0.0
    %323 = vmatprep.subr.mxu0 0.0
    %324 = vmatpush2.msra.mxu0 0.0
    %325 = vmatprep.subr.mxu0 0.0
    %326 = vmatpush2.msra.mxu0 0.0
    %327 = vmatprep.subr.mxu0 0.0
    %328 = vmatpush2.msra.mxu0 0.0
    %329 = vmatprep.mubr.f32.mxu0 0.0
    %330 = vmatmul.mubr.f32.gmra.mxu0 %v170
    %v331 = vpop.f32.mrf.mxu0
    %v332 = vadd.f32 %v166, %v331
    %v333 = vpop.f32.mrf.mxu0
    %334 = vmatprep.mubr.f32.mxu0 0.0
    %335 = vmatmul.mubr.f32.gmra.mxu0 %v173
    %v336 = vpop.f32.mrf.mxu0
    %v337 = vadd.f32 %v166, %v336
    %v338 = vpop.f32.mrf.mxu0
    %339 = vmatprep.mubr.f32.mxu0 0.0
    %340 = vmatmul.mubr.f32.gmra.mxu0 %v176
    %v341 = vpop.f32.mrf.mxu0
    %v342 = vadd.f32 %v166, %v341
    %v343 = vpop.f32.mrf.mxu0
    %344 = vmatprep.mubr.f32.mxu0 0.0
    %345 = vmatmul.mubr.f32.gmra.mxu0 %v179
    %v346 = vpop.f32.mrf.mxu0
    %v347 = vadd.f32 %v166, %v346
    %v348 = vpop.f32.mrf.mxu0
    %349 = vmatprep.mubr.f32.mxu0 0.0
    %350 = vmatmul.mubr.f32.gmra.mxu0 %v182
    %v351 = vpop.f32.mrf.mxu0
    %v352 = vadd.f32 %v166, %v351
    %v353 = vpop.f32.mrf.mxu0
    %354 = vmatprep.mubr.f32.mxu0 0.0
    %355 = vmatmul.mubr.f32.gmra.mxu0 %v185
    %v356 = vpop.f32.mrf.mxu0
    %v357 = vadd.f32 %v166, %v356
    %v358 = vpop.f32.mrf.mxu0
    %359 = vmatprep.mubr.f32.mxu0 0.0
    %360 = vmatmul.mubr.f32.gmra.mxu0 %v188
    %v361 = vpop.f32.mrf.mxu0
    %v362 = vadd.f32 %v166, %v361
    %v363 = vpop.f32.mrf.mxu0
    %364 = vmatprep.mubr.f32.mxu0 0.0
    %365 = vmatmul.mubr.f32.gmra.mxu0 %v191
    %v366 = vpop.f32.mrf.mxu0
    %v367 = vadd.f32 %v166, %v366
    %v368 = vpop.f32.mrf.mxu0
    %369 = vmatprep.mubr.f32.mxu0 0.0
    %370 = vmatmul.mubr.f32.gmra.mxu0 %v194
    %v371 = vpop.f32.mrf.mxu0
    %v372 = vadd.f32 %v166, %v371
    %v373 = vpop.f32.mrf.mxu0
    %374 = vmatprep.mubr.f32.mxu0 0.0
    %375 = vmatmul.mubr.f32.gmra.mxu0 %v197
    %v376 = vpop.f32.mrf.mxu0
    %v377 = vadd.f32 %v166, %v376
    %v378 = vpop.f32.mrf.mxu0
    %379 = vmatprep.mubr.f32.mxu0 0.0
    %380 = vmatmul.mubr.f32.gmra.mxu0 %v200
    %v381 = vpop.f32.mrf.mxu0
    %v382 = vadd.f32 %v166, %v381
    %v383 = vpop.f32.mrf.mxu0
    %384 = vmatprep.mubr.f32.mxu0 0.0
    %385 = vmatmul.mubr.f32.gmra.mxu0 %v203
    %v386 = vpop.f32.mrf.mxu0
    %v387 = vadd.f32 %v166, %v386
    %v388 = vpop.f32.mrf.mxu0
    %389 = vmatprep.mubr.f32.mxu0 0.0
    %390 = vmatmul.mubr.f32.gmra.mxu0 %v206
    %v391 = vpop.f32.mrf.mxu0
    %v392 = vadd.f32 %v166, %v391
    %v393 = vpop.f32.mrf.mxu0
    %394 = vmatprep.mubr.f32.mxu0 0.0
    %395 = vmatmul.mubr.f32.gmra.mxu0 %v209
    %v396 = vpop.f32.mrf.mxu0
    %v397 = vadd.f32 %v166, %v396
    %v398 = vpop.f32.mrf.mxu0
    %399 = vmatprep.mubr.f32.mxu0 0.0
    %400 = vmatmul.mubr.f32.gmra.mxu0 %v212
    %v401 = vpop.f32.mrf.mxu0
    %v402 = vadd.f32 %v166, %v401
    %v403 = vpop.f32.mrf.mxu0
    %404 = vmatprep.mubr.f32.mxu0 0.0
    %405 = vmatmul.mubr.f32.gmra.mxu0 %v215
    %v406 = vpop.f32.mrf.mxu0
    %v407 = vadd.f32 %v166, %v406
    %v408 = vpop.f32.mrf.mxu0
    %409 = vmatprep.mubr.f32.mxu0 0.0
    %410 = vmatmul.mubr.f32.gmra.mxu0 %v218
    %v411 = vpop.f32.mrf.mxu0
    %v412 = vadd.f32 %v166, %v411
    %v413 = vpop.f32.mrf.mxu0
    %414 = vmatprep.mubr.f32.mxu0 0.0
    %415 = vmatmul.mubr.f32.gmra.mxu0 %v221
    %v416 = vpop.f32.mrf.mxu0
    %v417 = vadd.f32 %v166, %v416
    %v418 = vpop.f32.mrf.mxu0
    %419 = vmatprep.mubr.f32.mxu0 0.0
    %420 = vmatmul.mubr.f32.gmra.mxu0 %v224
    %v421 = vpop.f32.mrf.mxu0
    %v422 = vadd.f32 %v166, %v421
    %v423 = vpop.f32.mrf.mxu0
    %424 = vmatprep.mubr.f32.mxu0 0.0
    %425 = vmatmul.mubr.f32.gmra.mxu0 %v227
    %v426 = vpop.f32.mrf.mxu0
    %v427 = vadd.f32 %v166, %v426
    %v428 = vpop.f32.mrf.mxu0
    %429 = vmatprep.mubr.f32.mxu0 0.0
    %430 = vmatmul.mubr.f32.gmra.mxu0 %v230
    %v431 = vpop.f32.mrf.mxu0
    %v432 = vadd.f32 %v166, %v431
    %v433 = vpop.f32.mrf.mxu0
    %434 = vmatprep.mubr.f32.mxu0 0.0
    %435 = vmatmul.mubr.f32.gmra.mxu0 %v233
    %v436 = vpop.f32.mrf.mxu0
    %v437 = vadd.f32 %v166, %v436
    %v438 = vpop.f32.mrf.mxu0
    %439 = vmatprep.mubr.f32.mxu0 0.0
    %440 = vmatmul.mubr.f32.gmra.mxu0 %v236
    %v441 = vpop.f32.mrf.mxu0
    %v442 = vadd.f32 %v166, %v441
    %v443 = vpop.f32.mrf.mxu0
    %444 = vmatprep.mubr.f32.mxu0 0.0
    %445 = vmatmul.mubr.f32.gmra.mxu0 %v239
    %v446 = vpop.f32.mrf.mxu0
    %v447 = vadd.f32 %v166, %v446
    %v448 = vpop.f32.mrf.mxu0
    %449 = vmatprep.mubr.f32.mxu0 0.0
    %450 = vmatmul.mubr.f32.gmra.mxu0 %v242
    %v451 = vpop.f32.mrf.mxu0
    %v452 = vadd.f32 %v166, %v451
    %v453 = vpop.f32.mrf.mxu0
    %454 = vmatprep.mubr.f32.mxu0 0.0
    %455 = vmatmul.mubr.f32.gmra.mxu0 %v245
    %v456 = vpop.f32.mrf.mxu0
    %v457 = vadd.f32 %v166, %v456
    %v458 = vpop.f32.mrf.mxu0
    %459 = vmatprep.mubr.f32.mxu0 0.0
    %460 = vmatmul.mubr.f32.gmra.mxu0 %v248
    %v461 = vpop.f32.mrf.mxu0
    %v462 = vadd.f32 %v166, %v461
    %v463 = vpop.f32.mrf.mxu0
    %464 = vmatprep.mubr.f32.mxu0 0.0
    %465 = vmatmul.mubr.f32.gmra.mxu0 %v251
    %v466 = vpop.f32.mrf.mxu0
    %v467 = vadd.f32 %v166, %v466
    %v468 = vpop.f32.mrf.mxu0
    %469 = vmatprep.mubr.f32.mxu0 0.0
    %470 = vmatmul.mubr.f32.gmra.mxu0 %v254
    %v471 = vpop.f32.mrf.mxu0
    %v472 = vadd.f32 %v166, %v471
    %v473 = vpop.f32.mrf.mxu0
    %474 = vmatprep.mubr.f32.mxu0 0.0
    %475 = vmatmul.mubr.f32.gmra.mxu0 %v257
    %v476 = vpop.f32.mrf.mxu0
    %v477 = vadd.f32 %v166, %v476
    %v478 = vpop.f32.mrf.mxu0
    %479 = vmatprep.mubr.f32.mxu0 0.0
    %480 = vmatmul.mubr.f32.gmra.mxu0 %v260
    %v481 = vpop.f32.mrf.mxu0
    %v482 = vadd.f32 %v166, %v481
    %v483 = vpop.f32.mrf.mxu0
    %484 = vmatprep.mubr.f32.mxu0 0.0
    %485 = vmatmul.mubr.f32.gmra.mxu0 %v263
    %v486 = vpop.f32.mrf.mxu0
    %v487 = vadd.f32 %v166, %v486
    %v488 = vpop.f32.mrf.mxu0
    %489 = vdwg.mxu0
    %v490 = vmax.f32 %v332, 0.0
    %v491 = vmax.f32 %v337, 0.0
    %v492 = vmax.f32 %v342, 0.0
    %v493 = vmax.f32 %v347, 0.0
    %v494 = vmax.f32 %v352, 0.0
    %v495 = vmax.f32 %v357, 0.0
    %v496 = vmax.f32 %v362, 0.0
    %v497 = vmax.f32 %v367, 0.0
    %v498 = vmax.f32 %v372, 0.0
    %v499 = vmax.f32 %v377, 0.0
    %v500 = vmax.f32 %v382, 0.0
    %v501 = vmax.f32 %v387, 0.0
    %v502 = vmax.f32 %v392, 0.0
    %v503 = vmax.f32 %v397, 0.0
    %v504 = vmax.f32 %v402, 0.0
    %v505 = vmax.f32 %v407, 0.0
    %v506 = vmax.f32 %v412, 0.0
    %v507 = vmax.f32 %v417, 0.0
    %v508 = vmax.f32 %v422, 0.0
    %v509 = vmax.f32 %v427, 0.0
    %v510 = vmax.f32 %v432, 0.0
    %v511 = vmax.f32 %v437, 0.0
    %v512 = vmax.f32 %v442, 0.0
    %v513 = vmax.f32 %v447, 0.0
    %v514 = vmax.f32 %v452, 0.0
    %v515 = vmax.f32 %v457, 0.0
    %v516 = vmax.f32 %v462, 0.0
    %v517 = vmax.f32 %v467, 0.0
    %v518 = vmax.f32 %v472, 0.0
    %v519 = vmax.f32 %v477, 0.0
    %v520 = vmax.f32 %v482, 0.0
    %v521 = vmax.f32 %v487, 0.0
    %v523 = vlaneseq
    %v524 = vshrl.u32 %v523, 7
    %v525 = vsub.s32 0, %v524
    %v526 = vrot.slane %v54, %v525
    %vm528 = vcmask 523264
    %v530 = vsel %vm528, %v490, 0
    %v533 = vsel %vm528, %v491, 0
    %v536 = vsel %vm528, %v492, 0
    %v539 = vsel %vm528, %v493, 0
    %v542 = vsel %vm528, %v494, 0
    %v545 = vsel %vm528, %v495, 0
    %v548 = vsel %vm528, %v496, 0
    %v551 = vsel %vm528, %v497, 0
    %v554 = vsel %vm528, %v498, 0
    %v557 = vsel %vm528, %v499, 0
    %v560 = vsel %vm528, %v500, 0
    %v563 = vsel %vm528, %v501, 0
    %v566 = vsel %vm528, %v502, 0
    %v569 = vsel %vm528, %v503, 0
    %v572 = vsel %vm528, %v504, 0
    %v575 = vsel %vm528, %v505, 0
    %v578 = vsel %vm528, %v506, 0
    %v581 = vsel %vm528, %v507, 0
    %v584 = vsel %vm528, %v508, 0
    %v587 = vsel %vm528, %v509, 0
    %v590 = vsel %vm528, %v510, 0
    %v593 = vsel %vm528, %v511, 0
    %v596 = vsel %vm528, %v512, 0
    %v599 = vsel %vm528, %v513, 0
    %v602 = vsel %vm528, %v514, 0
    %v605 = vsel %vm528, %v515, 0
    %v608 = vsel %vm528, %v516, 0
    %v611 = vsel %vm528, %v517, 0
    %v614 = vsel %vm528, %v518, 0
    %v617 = vsel %vm528, %v519, 0
    %v620 = vsel %vm528, %v520, 0
    %v623 = vsel %vm528, %v521, 0
    %625 = vmatprep.subr.mxu0 0.0
    %626 = vmatpush1.msra.mxu0 0.0
    %627 = vmatprep.subr.mxu0 0.0
    %628 = vmatpush1.msra.mxu0 0.0
    %629 = vmatprep.subr.mxu0 0.0
    %630 = vmatpush1.msra.mxu0 0.0
    %631 = vmatprep.subr.mxu0 0.0
    %632 = vmatpush1.msra.mxu0 0.0
    %633 = vmatprep.subr.mxu0 0.0
    %634 = vmatpush1.msra.mxu0 0.0
    %635 = vmatprep.subr.mxu0 0.0
    %636 = vmatpush1.msra.mxu0 0.0
    %637 = vmatprep.subr.mxu0 0.0
    %638 = vmatpush1.msra.mxu0 0.0
    %639 = vmatprep.subr.mxu0 0.0
    %640 = vmatpush1.msra.mxu0 0.0
    %641 = vmatprep.subr.mxu0 0.0
    %642 = vmatpush1.msra.mxu0 %v53
    %643 = vmatprep.subr.mxu0 0.0
    %644 = vmatpush1.msra.mxu0 %v52
    %645 = vmatprep.subr.mxu0 0.0
    %646 = vmatpush1.msra.mxu0 %v51
    %647 = vmatprep.subr.mxu0 0.0
    %648 = vmatpush1.msra.mxu0 %v50
    %649 = vmatprep.subr.mxu0 0.0
    %650 = vmatpush1.msra.mxu0 %v49
    %651 = vmatprep.subr.mxu0 0.0
    %652 = vmatpush1.msra.mxu0 %v48
    %653 = vmatprep.subr.mxu0 0.0
    %654 = vmatpush1.msra.mxu0 %v47
    %655 = vmatprep.subr.mxu0 0.0
    %656 = vmatpush1.msra.mxu0 %v46
    %657 = vmatprep.subr.mxu0 0.0
    %658 = vmatpush2.msra.mxu0 0.0
    %659 = vmatprep.subr.mxu0 0.0
    %660 = vmatpush2.msra.mxu0 0.0
    %661 = vmatprep.subr.mxu0 0.0
    %662 = vmatpush2.msra.mxu0 0.0
    %663 = vmatprep.subr.mxu0 0.0
    %664 = vmatpush2.msra.mxu0 0.0
    %665 = vmatprep.subr.mxu0 0.0
    %666 = vmatpush2.msra.mxu0 0.0
    %667 = vmatprep.subr.mxu0 0.0
    %668 = vmatpush2.msra.mxu0 0.0
    %669 = vmatprep.subr.mxu0 0.0
    %670 = vmatpush2.msra.mxu0 0.0
    %671 = vmatprep.subr.mxu0 0.0
    %672 = vmatpush2.msra.mxu0 0.0
    %673 = vmatprep.subr.mxu0 0.0
    %674 = vmatpush2.msra.mxu0 0.0
    %675 = vmatprep.subr.mxu0 0.0
    %676 = vmatpush2.msra.mxu0 0.0
    %677 = vmatprep.subr.mxu0 0.0
    %678 = vmatpush2.msra.mxu0 0.0
    %679 = vmatprep.subr.mxu0 0.0
    %680 = vmatpush2.msra.mxu0 0.0
    %681 = vmatprep.subr.mxu0 0.0
    %682 = vmatpush2.msra.mxu0 0.0
    %683 = vmatprep.subr.mxu0 0.0
    %684 = vmatpush2.msra.mxu0 0.0
    %685 = vmatprep.subr.mxu0 0.0
    %686 = vmatpush2.msra.mxu0 0.0
    %687 = vmatprep.subr.mxu0 0.0
    %688 = vmatpush2.msra.mxu0 0.0
    %689 = vmatprep.mubr.f32.mxu0 0.0
    %690 = vmatmul.mubr.f32.gmra.mxu0 %v530
    %v691 = vpop.f32.mrf.mxu0
    %v692 = vadd.f32 %v526, %v691
    %v693 = vpop.f32.mrf.mxu0
    %694 = vmatprep.mubr.f32.mxu0 0.0
    %695 = vmatmul.mubr.f32.gmra.mxu0 %v533
    %v696 = vpop.f32.mrf.mxu0
    %v697 = vadd.f32 %v526, %v696
    %v698 = vpop.f32.mrf.mxu0
    %699 = vmatprep.mubr.f32.mxu0 0.0
    %700 = vmatmul.mubr.f32.gmra.mxu0 %v536
    %v701 = vpop.f32.mrf.mxu0
    %v702 = vadd.f32 %v526, %v701
    %v703 = vpop.f32.mrf.mxu0
    %704 = vmatprep.mubr.f32.mxu0 0.0
    %705 = vmatmul.mubr.f32.gmra.mxu0 %v539
    %v706 = vpop.f32.mrf.mxu0
    %v707 = vadd.f32 %v526, %v706
    %v708 = vpop.f32.mrf.mxu0
    %709 = vmatprep.mubr.f32.mxu0 0.0
    %710 = vmatmul.mubr.f32.gmra.mxu0 %v542
    %v711 = vpop.f32.mrf.mxu0
    %v712 = vadd.f32 %v526, %v711
    %v713 = vpop.f32.mrf.mxu0
    %714 = vmatprep.mubr.f32.mxu0 0.0
    %715 = vmatmul.mubr.f32.gmra.mxu0 %v545
    %v716 = vpop.f32.mrf.mxu0
    %v717 = vadd.f32 %v526, %v716
    %v718 = vpop.f32.mrf.mxu0
    %719 = vmatprep.mubr.f32.mxu0 0.0
    %720 = vmatmul.mubr.f32.gmra.mxu0 %v548
    %v721 = vpop.f32.mrf.mxu0
    %v722 = vadd.f32 %v526, %v721
    %v723 = vpop.f32.mrf.mxu0
    %724 = vmatprep.mubr.f32.mxu0 0.0
    %725 = vmatmul.mubr.f32.gmra.mxu0 %v551
    %v726 = vpop.f32.mrf.mxu0
    %v727 = vadd.f32 %v526, %v726
    %v728 = vpop.f32.mrf.mxu0
    %729 = vmatprep.mubr.f32.mxu0 0.0
    %730 = vmatmul.mubr.f32.gmra.mxu0 %v554
    %v731 = vpop.f32.mrf.mxu0
    %v732 = vadd.f32 %v526, %v731
    %v733 = vpop.f32.mrf.mxu0
    %734 = vmatprep.mubr.f32.mxu0 0.0
    %735 = vmatmul.mubr.f32.gmra.mxu0 %v557
    %v736 = vpop.f32.mrf.mxu0
    %v737 = vadd.f32 %v526, %v736
    %v738 = vpop.f32.mrf.mxu0
    %739 = vmatprep.mubr.f32.mxu0 0.0
    %740 = vmatmul.mubr.f32.gmra.mxu0 %v560
    %v741 = vpop.f32.mrf.mxu0
    %v742 = vadd.f32 %v526, %v741
    %v743 = vpop.f32.mrf.mxu0
    %744 = vmatprep.mubr.f32.mxu0 0.0
    %745 = vmatmul.mubr.f32.gmra.mxu0 %v563
    %v746 = vpop.f32.mrf.mxu0
    %v747 = vadd.f32 %v526, %v746
    %v748 = vpop.f32.mrf.mxu0
    %749 = vmatprep.mubr.f32.mxu0 0.0
    %750 = vmatmul.mubr.f32.gmra.mxu0 %v566
    %v751 = vpop.f32.mrf.mxu0
    %v752 = vadd.f32 %v526, %v751
    %v753 = vpop.f32.mrf.mxu0
    %754 = vmatprep.mubr.f32.mxu0 0.0
    %755 = vmatmul.mubr.f32.gmra.mxu0 %v569
    %v756 = vpop.f32.mrf.mxu0
    %v757 = vadd.f32 %v526, %v756
    %v758 = vpop.f32.mrf.mxu0
    %759 = vmatprep.mubr.f32.mxu0 0.0
    %760 = vmatmul.mubr.f32.gmra.mxu0 %v572
    %v761 = vpop.f32.mrf.mxu0
    %v762 = vadd.f32 %v526, %v761
    %v763 = vpop.f32.mrf.mxu0
    %764 = vmatprep.mubr.f32.mxu0 0.0
    %765 = vmatmul.mubr.f32.gmra.mxu0 %v575
    %v766 = vpop.f32.mrf.mxu0
    %v767 = vadd.f32 %v526, %v766
    %v768 = vpop.f32.mrf.mxu0
    %769 = vmatprep.mubr.f32.mxu0 0.0
    %770 = vmatmul.mubr.f32.gmra.mxu0 %v578
    %v771 = vpop.f32.mrf.mxu0
    %v772 = vadd.f32 %v526, %v771
    %v773 = vpop.f32.mrf.mxu0
    %774 = vmatprep.mubr.f32.mxu0 0.0
    %775 = vmatmul.mubr.f32.gmra.mxu0 %v581
    %v776 = vpop.f32.mrf.mxu0
    %v777 = vadd.f32 %v526, %v776
    %v778 = vpop.f32.mrf.mxu0
    %779 = vmatprep.mubr.f32.mxu0 0.0
    %780 = vmatmul.mubr.f32.gmra.mxu0 %v584
    %v781 = vpop.f32.mrf.mxu0
    %v782 = vadd.f32 %v526, %v781
    %v783 = vpop.f32.mrf.mxu0
    %784 = vmatprep.mubr.f32.mxu0 0.0
    %785 = vmatmul.mubr.f32.gmra.mxu0 %v587
    %v786 = vpop.f32.mrf.mxu0
    %v787 = vadd.f32 %v526, %v786
    %v788 = vpop.f32.mrf.mxu0
    %789 = vmatprep.mubr.f32.mxu0 0.0
    %790 = vmatmul.mubr.f32.gmra.mxu0 %v590
    %v791 = vpop.f32.mrf.mxu0
    %v792 = vadd.f32 %v526, %v791
    %v793 = vpop.f32.mrf.mxu0
    %794 = vmatprep.mubr.f32.mxu0 0.0
    %795 = vmatmul.mubr.f32.gmra.mxu0 %v593
    %v796 = vpop.f32.mrf.mxu0
    %v797 = vadd.f32 %v526, %v796
    %v798 = vpop.f32.mrf.mxu0
    %799 = vmatprep.mubr.f32.mxu0 0.0
    %800 = vmatmul.mubr.f32.gmra.mxu0 %v596
    %v801 = vpop.f32.mrf.mxu0
    %v802 = vadd.f32 %v526, %v801
    %v803 = vpop.f32.mrf.mxu0
    %804 = vmatprep.mubr.f32.mxu0 0.0
    %805 = vmatmul.mubr.f32.gmra.mxu0 %v599
    %v806 = vpop.f32.mrf.mxu0
    %v807 = vadd.f32 %v526, %v806
    %v808 = vpop.f32.mrf.mxu0
    %809 = vmatprep.mubr.f32.mxu0 0.0
    %810 = vmatmul.mubr.f32.gmra.mxu0 %v602
    %v811 = vpop.f32.mrf.mxu0
    %v812 = vadd.f32 %v526, %v811
    %v813 = vpop.f32.mrf.mxu0
    %814 = vmatprep.mubr.f32.mxu0 0.0
    %815 = vmatmul.mubr.f32.gmra.mxu0 %v605
    %v816 = vpop.f32.mrf.mxu0
    %v817 = vadd.f32 %v526, %v816
    %v818 = vpop.f32.mrf.mxu0
    %819 = vmatprep.mubr.f32.mxu0 0.0
    %820 = vmatmul.mubr.f32.gmra.mxu0 %v608
    %v821 = vpop.f32.mrf.mxu0
    %v822 = vadd.f32 %v526, %v821
    %v823 = vpop.f32.mrf.mxu0
    %824 = vmatprep.mubr.f32.mxu0 0.0
    %825 = vmatmul.mubr.f32.gmra.mxu0 %v611
    %v826 = vpop.f32.mrf.mxu0
    %v827 = vadd.f32 %v526, %v826
    %v828 = vpop.f32.mrf.mxu0
    %829 = vmatprep.mubr.f32.mxu0 0.0
    %830 = vmatmul.mubr.f32.gmra.mxu0 %v614
    %v831 = vpop.f32.mrf.mxu0
    %v832 = vadd.f32 %v526, %v831
    %v833 = vpop.f32.mrf.mxu0
    %834 = vmatprep.mubr.f32.mxu0 0.0
    %835 = vmatmul.mubr.f32.gmra.mxu0 %v617
    %v836 = vpop.f32.mrf.mxu0
    %v837 = vadd.f32 %v526, %v836
    %v838 = vpop.f32.mrf.mxu0
    %839 = vmatprep.mubr.f32.mxu0 0.0
    %840 = vmatmul.mubr.f32.gmra.mxu0 %v620
    %v841 = vpop.f32.mrf.mxu0
    %v842 = vadd.f32 %v526, %v841
    %v843 = vpop.f32.mrf.mxu0
    %844 = vmatprep.mubr.f32.mxu0 0.0
    %845 = vmatmul.mubr.f32.gmra.mxu0 %v623
    %v846 = vpop.f32.mrf.mxu0
    %v847 = vadd.f32 %v526, %v846
    %v848 = vpop.f32.mrf.mxu0
    %849 = vdwg.mxu0
    %v850 = vmax.f32 %v692, 0.0
    %v851 = vmax.f32 %v697, 0.0
    %v852 = vmax.f32 %v702, 0.0
    %v853 = vmax.f32 %v707, 0.0
    %v854 = vmax.f32 %v712, 0.0
    %v855 = vmax.f32 %v717, 0.0
    %v856 = vmax.f32 %v722, 0.0
    %v857 = vmax.f32 %v727, 0.0
    %v858 = vmax.f32 %v732, 0.0
    %v859 = vmax.f32 %v737, 0.0
    %v860 = vmax.f32 %v742, 0.0
    %v861 = vmax.f32 %v747, 0.0
    %v862 = vmax.f32 %v752, 0.0
    %v863 = vmax.f32 %v757, 0.0
    %v864 = vmax.f32 %v762, 0.0
    %v865 = vmax.f32 %v767, 0.0
    %v866 = vmax.f32 %v772, 0.0
    %v867 = vmax.f32 %v777, 0.0
    %v868 = vmax.f32 %v782, 0.0
    %v869 = vmax.f32 %v787, 0.0
    %v870 = vmax.f32 %v792, 0.0
    %v871 = vmax.f32 %v797, 0.0
    %v872 = vmax.f32 %v802, 0.0
    %v873 = vmax.f32 %v807, 0.0
    %v874 = vmax.f32 %v812, 0.0
    %v875 = vmax.f32 %v817, 0.0
    %v876 = vmax.f32 %v822, 0.0
    %v877 = vmax.f32 %v827, 0.0
    %v878 = vmax.f32 %v832, 0.0
    %v879 = vmax.f32 %v837, 0.0
    %v880 = vmax.f32 %v842, 0.0
    %v881 = vmax.f32 %v847, 0.0
    %883 = vset.pattern.permute.xlu0 0
    %884 = vperm.xlu0 %883, %v91
    %v885 = vpop.permute.xlu0 %884
    %888 = vset.pattern.permute.xlu0 0
    %889 = vperm.xlu0 %888, %v92
    %v890 = vpop.permute.xlu0 %889
    %v893 = vsel %vm168, %v75, 0
    %v896 = vsel %vm168, %v76, 0
    %v899 = vsel %vm168, %v850, 0
    %v902 = vsel %vm168, %v851, 0
    %v905 = vsel %vm168, %v852, 0
    %v908 = vsel %vm168, %v853, 0
    %v911 = vsel %vm168, %v854, 0
    %v914 = vsel %vm168, %v855, 0
    %v917 = vsel %vm168, %v856, 0
    %v920 = vsel %vm168, %v857, 0
    %v923 = vsel %vm168, %v858, 0
    %v926 = vsel %vm168, %v859, 0
    %v929 = vsel %vm168, %v860, 0
    %v932 = vsel %vm168, %v861, 0
    %v935 = vsel %vm168, %v862, 0
    %v938 = vsel %vm168, %v863, 0
    %v941 = vsel %vm168, %v864, 0
    %v944 = vsel %vm168, %v865, 0
    %v947 = vsel %vm168, %v866, 0
    %v950 = vsel %vm168, %v867, 0
    %v953 = vsel %vm168, %v868, 0
    %v956 = vsel %vm168, %v869, 0
    %v959 = vsel %vm168, %v870, 0
    %v962 = vsel %vm168, %v871, 0
    %v965 = vsel %vm168, %v872, 0
    %v968 = vsel %vm168, %v873, 0
    %v971 = vsel %vm168, %v874, 0
    %v974 = vsel %vm168, %v875, 0
    %v977 = vsel %vm168, %v876, 0
    %v980 = vsel %vm168, %v877, 0
    %v983 = vsel %vm168, %v878, 0
    %v986 = vsel %vm168, %v879, 0
    %v989 = vsel %vm168, %v880, 0
    %v992 = vsel %vm168, %v881, 0
    %994 = vmatprep.subr.mxu0 0.0
    %995 = vmatpush1.xpose.msra.mxu0 %v944
    %996 = vmatprep.subr.mxu0 0.0
    %997 = vmatpush1.xpose.msra.mxu0 %v941
    %998 = vmatprep.subr.mxu0 0.0
    %999 = vmatpush1.xpose.msra.mxu0 %v938
    %1000 = vmatprep.subr.mxu0 0.0
    %1001 = vmatpush1.xpose.msra.mxu0 %v935
    %1002 = vmatprep.subr.mxu0 0.0
    %1003 = vmatpush1.xpose.msra.mxu0 %v932
    %1004 = vmatprep.subr.mxu0 0.0
    %1005 = vmatpush1.xpose.msra.mxu0 %v929
    %1006 = vmatprep.subr.mxu0 0.0
    %1007 = vmatpush1.xpose.msra.mxu0 %v926
    %1008 = vmatprep.subr.mxu0 0.0
    %1009 = vmatpush1.xpose.msra.mxu0 %v923
    %1010 = vmatprep.subr.mxu0 0.0
    %1011 = vmatpush1.xpose.msra.mxu0 %v920
    %1012 = vmatprep.subr.mxu0 0.0
    %1013 = vmatpush1.xpose.msra.mxu0 %v917
    %1014 = vmatprep.subr.mxu0 0.0
    %1015 = vmatpush1.xpose.msra.mxu0 %v914
    %1016 = vmatprep.subr.mxu0 0.0
    %1017 = vmatpush1.xpose.msra.mxu0 %v911
    %1018 = vmatprep.subr.mxu0 0.0
    %1019 = vmatpush1.xpose.msra.mxu0 %v908
    %1020 = vmatprep.subr.mxu0 0.0
    %1021 = vmatpush1.xpose.msra.mxu0 %v905
    %1022 = vmatprep.subr.mxu0 0.0
    %1023 = vmatpush1.xpose.msra.mxu0 %v902
    %1024 = vmatprep.subr.mxu0 0.0
    %1025 = vmatpush1.xpose.msra.mxu0 %v899
    %1026 = vmatprep.subr.mxu0 0.0
    %1027 = vmatpush2.xpose.msra.mxu0 %v992
    %1028 = vmatprep.subr.mxu0 0.0
    %1029 = vmatpush2.xpose.msra.mxu0 %v989
    %1030 = vmatprep.subr.mxu0 0.0
    %1031 = vmatpush2.xpose.msra.mxu0 %v986
    %1032 = vmatprep.subr.mxu0 0.0
    %1033 = vmatpush2.xpose.msra.mxu0 %v983
    %1034 = vmatprep.subr.mxu0 0.0
    %1035 = vmatpush2.xpose.msra.mxu0 %v980
    %1036 = vmatprep.subr.mxu0 0.0
    %1037 = vmatpush2.xpose.msra.mxu0 %v977
    %1038 = vmatprep.subr.mxu0 0.0
    %1039 = vmatpush2.xpose.msra.mxu0 %v974
    %1040 = vmatprep.subr.mxu0 0.0
    %1041 = vmatpush2.xpose.msra.mxu0 %v971
    %1042 = vmatprep.subr.mxu0 0.0
    %1043 = vmatpush2.xpose.msra.mxu0 %v968
    %1044 = vmatprep.subr.mxu0 0.0
    %1045 = vmatpush2.xpose.msra.mxu0 %v965
    %1046 = vmatprep.subr.mxu0 0.0
    %1047 = vmatpush2.xpose.msra.mxu0 %v962
    %1048 = vmatprep.subr.mxu0 0.0
    %1049 = vmatpush2.xpose.msra.mxu0 %v959
    %1050 = vmatprep.subr.mxu0 0.0
    %1051 = vmatpush2.xpose.msra.mxu0 %v956
    %1052 = vmatprep.subr.mxu0 0.0
    %1053 = vmatpush2.xpose.msra.mxu0 %v953
    %1054 = vmatprep.subr.mxu0 0.0
    %1055 = vmatpush2.xpose.msra.mxu0 %v950
    %1056 = vmatprep.subr.mxu0 0.0
    %1057 = vmatpush2.xpose.msra.mxu0 %v947
    %1058 = vmatprep.mubr.f32.mxu0 0.0
    %1059 = vmatmul.mubr.f32.gmra.mxu0 %v893
    %v1060 = vpop.f32.mrf.mxu0
    %v1061 = vadd.f32 %v885, %v1060
    %v1062 = vpop.f32.mrf.mxu0
    %v1063 = vadd.f32 %v885, %v1062
    %1064 = vmatprep.mubr.f32.mxu0 0.0
    %1065 = vmatmul.mubr.f32.gmra.mxu0 %v896
    %v1066 = vpop.f32.mrf.mxu0
    %v1067 = vadd.f32 %v890, %v1066
    %v1068 = vpop.f32.mrf.mxu0
    %v1069 = vadd.f32 %v890, %v1068
    %1070 = vdwg.mxu0
    %v1071 = vmax.f32 %v1061, 0.0
    %v1072 = vmax.f32 %v1063, 0.0
    %v1073 = vmax.f32 %v1067, 0.0
    %v1074 = vmax.f32 %v1069, 0.0
    %1076 = vset.pattern.permute.xlu0 0
    %1077 = vperm.xlu0 %1076, %v127
    %v1078 = vpop.permute.xlu0 %1077
    %vm1080 = vcmask 130048
    %v1082 = vsel %vm1080, %v111, 0
    %1084 = vmatprep.subr.mxu0 0.0
    %1085 = vmatpush1.msra.mxu0 0.0
    %1086 = vmatprep.subr.mxu0 0.0
    %1087 = vmatpush1.msra.mxu0 0.0
    %1088 = vmatprep.subr.mxu0 0.0
    %1089 = vmatpush1.msra.mxu0 0.0
    %1090 = vmatprep.subr.mxu0 0.0
    %1091 = vmatpush1.msra.mxu0 0.0
    %1092 = vmatprep.subr.mxu0 0.0
    %1093 = vmatpush1.msra.mxu0 0.0
    %1094 = vmatprep.subr.mxu0 0.0
    %1095 = vmatpush1.msra.mxu0 0.0
    %1096 = vmatprep.subr.mxu0 0.0
    %1097 = vmatpush1.msra.mxu0 0.0
    %1098 = vmatprep.subr.mxu0 0.0
    %1099 = vmatpush1.msra.mxu0 0.0
    %1100 = vmatprep.subr.mxu0 0.0
    %1101 = vmatpush1.msra.mxu0 0.0
    %1102 = vmatprep.subr.mxu0 0.0
    %1103 = vmatpush1.msra.mxu0 0.0
    %1104 = vmatprep.subr.mxu0 0.0
    %1105 = vmatpush1.msra.mxu0 0.0
    %1106 = vmatprep.subr.mxu0 0.0
    %1107 = vmatpush1.msra.mxu0 0.0
    %1108 = vmatprep.subr.mxu0 0.0
    %1109 = vmatpush1.msra.mxu0 0.0
    %1110 = vmatprep.subr.mxu0 0.0
    %1111 = vmatpush1.msra.mxu0 0.0
    %1112 = vmatprep.subr.mxu0 %v1074
    %1113 = vmatpush1.msra.mxu0 %v1073
    %1114 = vmatprep.subr.mxu0 %v1072
    %1115 = vmatpush1.msra.mxu0 %v1071
    %1116 = vmatprep.subr.mxu0 0.0
    %1117 = vmatpush2.msra.mxu0 0.0
    %1118 = vmatprep.subr.mxu0 0.0
    %1119 = vmatpush2.msra.mxu0 0.0
    %1120 = vmatprep.subr.mxu0 0.0
    %1121 = vmatpush2.msra.mxu0 0.0
    %1122 = vmatprep.subr.mxu0 0.0
    %1123 = vmatpush2.msra.mxu0 0.0
    %1124 = vmatprep.subr.mxu0 0.0
    %1125 = vmatpush2.msra.mxu0 0.0
    %1126 = vmatprep.subr.mxu0 0.0
    %1127 = vmatpush2.msra.mxu0 0.0
    %1128 = vmatprep.subr.mxu0 0.0
    %1129 = vmatpush2.msra.mxu0 0.0
    %1130 = vmatprep.subr.mxu0 0.0
    %1131 = vmatpush2.msra.mxu0 0.0
    %1132 = vmatprep.subr.mxu0 0.0
    %1133 = vmatpush2.msra.mxu0 0.0
    %1134 = vmatprep.subr.mxu0 0.0
    %1135 = vmatpush2.msra.mxu0 0.0
    %1136 = vmatprep.subr.mxu0 0.0
    %1137 = vmatpush2.msra.mxu0 0.0
    %1138 = vmatprep.subr.mxu0 0.0
    %1139 = vmatpush2.msra.mxu0 0.0
    %1140 = vmatprep.subr.mxu0 0.0
    %1141 = vmatpush2.msra.mxu0 0.0
    %1142 = vmatprep.subr.mxu0 0.0
    %1143 = vmatpush2.msra.mxu0 0.0
    %1144 = vmatprep.subr.mxu0 0.0
    %1145 = vmatpush2.msra.mxu0 0.0
    %1146 = vmatprep.subr.mxu0 0.0
    %1147 = vmatpush2.msra.mxu0 0.0
    %1148 = vmatprep.mubr.f32.mxu0 0.0
    %1149 = vmatmul.mubr.f32.gmra.mxu0 %v1082
    %v1150 = vpop.f32.mrf.mxu0
    %v1151 = vadd.f32 %v1078, %v1150
    %v1152 = vpop.f32.mrf.mxu0
    %v1153 = vadd.f32 %v1078, %v1152
    %1154 = vdwg.mxu0
    %v1155 = vmax.f32 %v1151, 0.0
    %v1156 = vmax.f32 %v1153, 0.0
    %1158 = vset.pattern.permute.xlu0 0
    %1159 = vperm.xlu0 %1158, %v128
    %v1160 = vpop.permute.xlu0 %1159
    %v1162 = vmul.f32 %v1155, %v1160
    %v1163 = vmul.f32 %v1156, %v1160
    %v1164 = vrot.slane %v1162, 4
    %v1165 = vadd.f32 %v1162, %v1164
    %v1166 = vrot.slane %v1165, 2
    %v1167 = vadd.f32 %v1165, %v1166
    %v1168 = vrot.slane %v1167, 1
    %v1169 = vadd.f32 %v1167, %v1168
    %v1170 = vrot.slane %v1163, 4
    %v1171 = vadd.f32 %v1163, %v1170
    %v1172 = vrot.slane %v1171, 2
    %v1173 = vadd.f32 %v1171, %v1172
    %v1174 = vrot.slane %v1173, 1
    %v1175 = vadd.f32 %v1173, %v1174
    %1177 = vset.pattern.permute.xlu0 0
    %1178 = vperm.xlu0 %1177, %v129
    %v1179 = vpop.permute.xlu0 %1178
    %v1181 = vlaneseq
    %v1182 = vshrl.u32 %v1181, 7
    %v1183 = vsub.s32 0, %v1182
    %v1184 = vrot.slane %v1179, %v1183
    %v1185 = vadd.f32 %v1169, %v1184
    %v1186 = vadd.f32 %v1175, %v1184
    %v1187 = vxor.u32 %v1185, 2147483648
    %v1188 = vxor.u32 %v1186, 2147483648
    %v1189 = vmul.f32 %v1187, 1.442695
    %v1190 = vpow.pop %v1189
    %v1191 = vmul.f32 %v1188, 1.442695
    %v1192 = vpow.pop %v1191
    %v1193 = vadd.f32 %v1190, 1.0
    %v1194 = vadd.f32 %v1192, 1.0
    %v1195 = vrcp.pop %v1193
    %v1196 = vmul.f32 1.0, %v1195
    %v1197 = vrcp.pop %v1194
    %v1198 = vmul.f32 1.0, %v1197
    %v1201 = vcombine.low %v1196, %v1198
    %v1203 = vunpack.c.l.s4 1966171168
    %v1204 = vunpack.c.0.s8 %v1203
    %v1205 = vlaneseq
    %v1206 = vshrl.u32 %v1205, 7
    %v1207 = vsub.s32 %v1204, %v1206
    %v1208 = vrot.slane %v1201, %v1207
    %v1210 = vunpack.c.l.s4 1966171168
    %v1211 = vunpack.c.0.s8 %v1210
    %v1212 = vlaneseq
    %v1213 = vshrl.u32 %v1212, 7
    %v1214 = vsub.s32 %v1211, %v1213
    %v1215 = vrot.slane %v1208, %v1214
    %v1217 = vlaneseq
    %vm1218 = vcmp.ge.s32.totalorder %v1217, 0
    %vm1219 = vcmp.lt.s32.totalorder %v1217, 256
    %vm1220 = vmand %vm1218, %vm1219
    %1221 = vst.msk [vmem:[#allocation3] sm:$0x3] %vm1220, %v1215
    %s1222 = scalar_lea.vmem %s0, 256
    %v1223 = vld [vmem:[%s1222] sm:$0xff]
    %v1224 = vld [vmem:[%s1222 + $0x8] sm:$0xff]
    %v1225 = vld [vmem:[%s1222 + $0x10] sm:$0xff]
    %v1226 = vld [vmem:[%s1222 + $0x18] sm:$0xff]
    %v1227 = vld [vmem:[%s1222 + $0x20] sm:$0xff]
    %v1228 = vld [vmem:[%s1222 + $0x28] sm:$0xff]
    %v1229 = vld [vmem:[%s1222 + $0x30] sm:$0xff]
    %v1230 = vld [vmem:[%s1222 + $0x38] sm:$0xff]
    %v1231 = vld [vmem:[%s1222 + $0x40] sm:$0xff]
    %v1232 = vld [vmem:[%s1222 + $0x48] sm:$0xff]
    %v1233 = vld [vmem:[%s1222 + $0x50] sm:$0xff]
    %v1234 = vld [vmem:[%s1222 + $0x58] sm:$0xff]
    %v1235 = vld [vmem:[%s1222 + $0x60] sm:$0xff]
    %v1236 = vld [vmem:[%s1222 + $0x68] sm:$0xff]
    %v1237 = vld [vmem:[%s1222 + $0x70] sm:$0xff]
    %v1238 = vld [vmem:[%s1222 + $0x78] sm:$0xff]
    %v1239 = vld [vmem:[%s1222 + $0x80] sm:$0xff]
    %v1240 = vld [vmem:[%s1222 + $0x88] sm:$0xff]
    %v1241 = vld [vmem:[%s1222 + $0x90] sm:$0xff]
    %v1242 = vld [vmem:[%s1222 + $0x98] sm:$0xff]
    %v1243 = vld [vmem:[%s1222 + $0xa0] sm:$0xff]
    %v1244 = vld [vmem:[%s1222 + $0xa8] sm:$0xff]
    %v1245 = vld [vmem:[%s1222 + $0xb0] sm:$0xff]
    %v1246 = vld [vmem:[%s1222 + $0xb8] sm:$0xff]
    %v1247 = vld [vmem:[%s1222 + $0xc0] sm:$0xff]
    %v1248 = vld [vmem:[%s1222 + $0xc8] sm:$0xff]
    %v1249 = vld [vmem:[%s1222 + $0xd0] sm:$0xff]
    %v1250 = vld [vmem:[%s1222 + $0xd8] sm:$0xff]
    %v1251 = vld [vmem:[%s1222 + $0xe0] sm:$0xff]
    %v1252 = vld [vmem:[%s1222 + $0xe8] sm:$0xff]
    %v1253 = vld [vmem:[%s1222 + $0xf0] sm:$0xff]
    %v1254 = vld [vmem:[%s1222 + $0xf8] sm:$0xff]
    %v1256 = vsel %vm168, %v1223, 0
    %v1259 = vsel %vm168, %v1224, 0
    %v1262 = vsel %vm168, %v1225, 0
    %v1265 = vsel %vm168, %v1226, 0
    %v1268 = vsel %vm168, %v1227, 0
    %v1271 = vsel %vm168, %v1228, 0
    %v1274 = vsel %vm168, %v1229, 0
    %v1277 = vsel %vm168, %v1230, 0
    %v1280 = vsel %vm168, %v1231, 0
    %v1283 = vsel %vm168, %v1232, 0
    %v1286 = vsel %vm168, %v1233, 0
    %v1289 = vsel %vm168, %v1234, 0
    %v1292 = vsel %vm168, %v1235, 0
    %v1295 = vsel %vm168, %v1236, 0
    %v1298 = vsel %vm168, %v1237, 0
    %v1301 = vsel %vm168, %v1238, 0
    %v1304 = vsel %vm168, %v1239, 0
    %v1307 = vsel %vm168, %v1240, 0
    %v1310 = vsel %vm168, %v1241, 0
    %v1313 = vsel %vm168, %v1242, 0
    %v1316 = vsel %vm168, %v1243, 0
    %v1319 = vsel %vm168, %v1244, 0
    %v1322 = vsel %vm168, %v1245, 0
    %v1325 = vsel %vm168, %v1246, 0
    %v1328 = vsel %vm168, %v1247, 0
    %v1331 = vsel %vm168, %v1248, 0
    %v1334 = vsel %vm168, %v1249, 0
    %v1337 = vsel %vm168, %v1250, 0
    %v1340 = vsel %vm168, %v1251, 0
    %v1343 = vsel %vm168, %v1252, 0
    %v1346 = vsel %vm168, %v1253, 0
    %v1349 = vsel %vm168, %v1254, 0
    %1351 = vmatprep.subr.mxu0 0.0
    %1352 = vmatpush1.msra.mxu0 0.0
    %1353 = vmatprep.subr.mxu0 0.0
    %1354 = vmatpush1.msra.mxu0 0.0
    %1355 = vmatprep.subr.mxu0 0.0
    %1356 = vmatpush1.msra.mxu0 0.0
    %1357 = vmatprep.subr.mxu0 0.0
    %1358 = vmatpush1.msra.mxu0 0.0
    %1359 = vmatprep.subr.mxu0 0.0
    %1360 = vmatpush1.msra.mxu0 0.0
    %1361 = vmatprep.subr.mxu0 0.0
    %1362 = vmatpush1.msra.mxu0 0.0
    %1363 = vmatprep.subr.mxu0 0.0
    %1364 = vmatpush1.msra.mxu0 0.0
    %1365 = vmatprep.subr.mxu0 0.0
    %1366 = vmatpush1.msra.mxu0 0.0
    %1367 = vmatprep.subr.mxu0 0.0
    %1368 = vmatpush1.msra.mxu0 0.0
    %1369 = vmatprep.subr.mxu0 0.0
    %1370 = vmatpush1.msra.mxu0 0.0
    %1371 = vmatprep.subr.mxu0 0.0
    %1372 = vmatpush1.msra.mxu0 0.0
    %1373 = vmatprep.subr.mxu0 0.0
    %1374 = vmatpush1.msra.mxu0 0.0
    %1375 = vmatprep.subr.mxu0 0.0
    %1376 = vmatpush1.msra.mxu0 %v44
    %1377 = vmatprep.subr.mxu0 0.0
    %1378 = vmatpush1.msra.mxu0 %v43
    %1379 = vmatprep.subr.mxu0 0.0
    %1380 = vmatpush1.msra.mxu0 %v42
    %1381 = vmatprep.subr.mxu0 0.0
    %1382 = vmatpush1.msra.mxu0 %v41
    %1383 = vmatprep.subr.mxu0 0.0
    %1384 = vmatpush2.msra.mxu0 0.0
    %1385 = vmatprep.subr.mxu0 0.0
    %1386 = vmatpush2.msra.mxu0 0.0
    %1387 = vmatprep.subr.mxu0 0.0
    %1388 = vmatpush2.msra.mxu0 0.0
    %1389 = vmatprep.subr.mxu0 0.0
    %1390 = vmatpush2.msra.mxu0 0.0
    %1391 = vmatprep.subr.mxu0 0.0
    %1392 = vmatpush2.msra.mxu0 0.0
    %1393 = vmatprep.subr.mxu0 0.0
    %1394 = vmatpush2.msra.mxu0 0.0
    %1395 = vmatprep.subr.mxu0 0.0
    %1396 = vmatpush2.msra.mxu0 0.0
    %1397 = vmatprep.subr.mxu0 0.0
    %1398 = vmatpush2.msra.mxu0 0.0
    %1399 = vmatprep.subr.mxu0 0.0
    %1400 = vmatpush2.msra.mxu0 0.0
    %1401 = vmatprep.subr.mxu0 0.0
    %1402 = vmatpush2.msra.mxu0 0.0
    %1403 = vmatprep.subr.mxu0 0.0
    %1404 = vmatpush2.msra.mxu0 0.0
    %1405 = vmatprep.subr.mxu0 0.0
    %1406 = vmatpush2.msra.mxu0 0.0
    %1407 = vmatprep.subr.mxu0 0.0
    %1408 = vmatpush2.msra.mxu0 0.0
    %1409 = vmatprep.subr.mxu0 0.0
    %1410 = vmatpush2.msra.mxu0 0.0
    %1411 = vmatprep.subr.mxu0 0.0
    %1412 = vmatpush2.msra.mxu0 0.0
    %1413 = vmatprep.subr.mxu0 0.0
    %1414 = vmatpush2.msra.mxu0 0.0
    %1415 = vmatprep.mubr.f32.mxu0 0.0
    %1416 = vmatmul.mubr.f32.gmra.mxu0 %v1256
    %v1417 = vpop.f32.mrf.mxu0
    %v1418 = vadd.f32 %v166, %v1417
    %v1419 = vpop.f32.mrf.mxu0
    %1420 = vmatprep.mubr.f32.mxu0 0.0
    %1421 = vmatmul.mubr.f32.gmra.mxu0 %v1259
    %v1422 = vpop.f32.mrf.mxu0
    %v1423 = vadd.f32 %v166, %v1422
    %v1424 = vpop.f32.mrf.mxu0
    %1425 = vmatprep.mubr.f32.mxu0 0.0
    %1426 = vmatmul.mubr.f32.gmra.mxu0 %v1262
    %v1427 = vpop.f32.mrf.mxu0
    %v1428 = vadd.f32 %v166, %v1427
    %v1429 = vpop.f32.mrf.mxu0
    %1430 = vmatprep.mubr.f32.mxu0 0.0
    %1431 = vmatmul.mubr.f32.gmra.mxu0 %v1265
    %v1432 = vpop.f32.mrf.mxu0
    %v1433 = vadd.f32 %v166, %v1432
    %v1434 = vpop.f32.mrf.mxu0
    %1435 = vmatprep.mubr.f32.mxu0 0.0
    %1436 = vmatmul.mubr.f32.gmra.mxu0 %v1268
    %v1437 = vpop.f32.mrf.mxu0
    %v1438 = vadd.f32 %v166, %v1437
    %v1439 = vpop.f32.mrf.mxu0
    %1440 = vmatprep.mubr.f32.mxu0 0.0
    %1441 = vmatmul.mubr.f32.gmra.mxu0 %v1271
    %v1442 = vpop.f32.mrf.mxu0
    %v1443 = vadd.f32 %v166, %v1442
    %v1444 = vpop.f32.mrf.mxu0
    %1445 = vmatprep.mubr.f32.mxu0 0.0
    %1446 = vmatmul.mubr.f32.gmra.mxu0 %v1274
    %v1447 = vpop.f32.mrf.mxu0
    %v1448 = vadd.f32 %v166, %v1447
    %v1449 = vpop.f32.mrf.mxu0
    %1450 = vmatprep.mubr.f32.mxu0 0.0
    %1451 = vmatmul.mubr.f32.gmra.mxu0 %v1277
    %v1452 = vpop.f32.mrf.mxu0
    %v1453 = vadd.f32 %v166, %v1452
    %v1454 = vpop.f32.mrf.mxu0
    %1455 = vmatprep.mubr.f32.mxu0 0.0
    %1456 = vmatmul.mubr.f32.gmra.mxu0 %v1280
    %v1457 = vpop.f32.mrf.mxu0
    %v1458 = vadd.f32 %v166, %v1457
    %v1459 = vpop.f32.mrf.mxu0
    %1460 = vmatprep.mubr.f32.mxu0 0.0
    %1461 = vmatmul.mubr.f32.gmra.mxu0 %v1283
    %v1462 = vpop.f32.mrf.mxu0
    %v1463 = vadd.f32 %v166, %v1462
    %v1464 = vpop.f32.mrf.mxu0
    %1465 = vmatprep.mubr.f32.mxu0 0.0
    %1466 = vmatmul.mubr.f32.gmra.mxu0 %v1286
    %v1467 = vpop.f32.mrf.mxu0
    %v1468 = vadd.f32 %v166, %v1467
    %v1469 = vpop.f32.mrf.mxu0
    %1470 = vmatprep.mubr.f32.mxu0 0.0
    %1471 = vmatmul.mubr.f32.gmra.mxu0 %v1289
    %v1472 = vpop.f32.mrf.mxu0
    %v1473 = vadd.f32 %v166, %v1472
    %v1474 = vpop.f32.mrf.mxu0
    %1475 = vmatprep.mubr.f32.mxu0 0.0
    %1476 = vmatmul.mubr.f32.gmra.mxu0 %v1292
    %v1477 = vpop.f32.mrf.mxu0
    %v1478 = vadd.f32 %v166, %v1477
    %v1479 = vpop.f32.mrf.mxu0
    %1480 = vmatprep.mubr.f32.mxu0 0.0
    %1481 = vmatmul.mubr.f32.gmra.mxu0 %v1295
    %v1482 = vpop.f32.mrf.mxu0
    %v1483 = vadd.f32 %v166, %v1482
    %v1484 = vpop.f32.mrf.mxu0
    %1485 = vmatprep.mubr.f32.mxu0 0.0
    %1486 = vmatmul.mubr.f32.gmra.mxu0 %v1298
    %v1487 = vpop.f32.mrf.mxu0
    %v1488 = vadd.f32 %v166, %v1487
    %v1489 = vpop.f32.mrf.mxu0
    %1490 = vmatprep.mubr.f32.mxu0 0.0
    %1491 = vmatmul.mubr.f32.gmra.mxu0 %v1301
    %v1492 = vpop.f32.mrf.mxu0
    %v1493 = vadd.f32 %v166, %v1492
    %v1494 = vpop.f32.mrf.mxu0
    %1495 = vmatprep.mubr.f32.mxu0 0.0
    %1496 = vmatmul.mubr.f32.gmra.mxu0 %v1304
    %v1497 = vpop.f32.mrf.mxu0
    %v1498 = vadd.f32 %v166, %v1497
    %v1499 = vpop.f32.mrf.mxu0
    %1500 = vmatprep.mubr.f32.mxu0 0.0
    %1501 = vmatmul.mubr.f32.gmra.mxu0 %v1307
    %v1502 = vpop.f32.mrf.mxu0
    %v1503 = vadd.f32 %v166, %v1502
    %v1504 = vpop.f32.mrf.mxu0
    %1505 = vmatprep.mubr.f32.mxu0 0.0
    %1506 = vmatmul.mubr.f32.gmra.mxu0 %v1310
    %v1507 = vpop.f32.mrf.mxu0
    %v1508 = vadd.f32 %v166, %v1507
    %v1509 = vpop.f32.mrf.mxu0
    %1510 = vmatprep.mubr.f32.mxu0 0.0
    %1511 = vmatmul.mubr.f32.gmra.mxu0 %v1313
    %v1512 = vpop.f32.mrf.mxu0
    %v1513 = vadd.f32 %v166, %v1512
    %v1514 = vpop.f32.mrf.mxu0
    %1515 = vmatprep.mubr.f32.mxu0 0.0
    %1516 = vmatmul.mubr.f32.gmra.mxu0 %v1316
    %v1517 = vpop.f32.mrf.mxu0
    %v1518 = vadd.f32 %v166, %v1517
    %v1519 = vpop.f32.mrf.mxu0
    %1520 = vmatprep.mubr.f32.mxu0 0.0
    %1521 = vmatmul.mubr.f32.gmra.mxu0 %v1319
    %v1522 = vpop.f32.mrf.mxu0
    %v1523 = vadd.f32 %v166, %v1522
    %v1524 = vpop.f32.mrf.mxu0
    %1525 = vmatprep.mubr.f32.mxu0 0.0
    %1526 = vmatmul.mubr.f32.gmra.mxu0 %v1322
    %v1527 = vpop.f32.mrf.mxu0
    %v1528 = vadd.f32 %v166, %v1527
    %v1529 = vpop.f32.mrf.mxu0
    %1530 = vmatprep.mubr.f32.mxu0 0.0
    %1531 = vmatmul.mubr.f32.gmra.mxu0 %v1325
    %v1532 = vpop.f32.mrf.mxu0
    %v1533 = vadd.f32 %v166, %v1532
    %v1534 = vpop.f32.mrf.mxu0
    %1535 = vmatprep.mubr.f32.mxu0 0.0
    %1536 = vmatmul.mubr.f32.gmra.mxu0 %v1328
    %v1537 = vpop.f32.mrf.mxu0
    %v1538 = vadd.f32 %v166, %v1537
    %v1539 = vpop.f32.mrf.mxu0
    %1540 = vmatprep.mubr.f32.mxu0 0.0
    %1541 = vmatmul.mubr.f32.gmra.mxu0 %v1331
    %v1542 = vpop.f32.mrf.mxu0
    %v1543 = vadd.f32 %v166, %v1542
    %v1544 = vpop.f32.mrf.mxu0
    %1545 = vmatprep.mubr.f32.mxu0 0.0
    %1546 = vmatmul.mubr.f32.gmra.mxu0 %v1334
    %v1547 = vpop.f32.mrf.mxu0
    %v1548 = vadd.f32 %v166, %v1547
    %v1549 = vpop.f32.mrf.mxu0
    %1550 = vmatprep.mubr.f32.mxu0 0.0
    %1551 = vmatmul.mubr.f32.gmra.mxu0 %v1337
    %v1552 = vpop.f32.mrf.mxu0
    %v1553 = vadd.f32 %v166, %v1552
    %v1554 = vpop.f32.mrf.mxu0
    %1555 = vmatprep.mubr.f32.mxu0 0.0
    %1556 = vmatmul.mubr.f32.gmra.mxu0 %v1340
    %v1557 = vpop.f32.mrf.mxu0
    %v1558 = vadd.f32 %v166, %v1557
    %v1559 = vpop.f32.mrf.mxu0
    %1560 = vmatprep.mubr.f32.mxu0 0.0
    %1561 = vmatmul.mubr.f32.gmra.mxu0 %v1343
    %v1562 = vpop.f32.mrf.mxu0
    %v1563 = vadd.f32 %v166, %v1562
    %v1564 = vpop.f32.mrf.mxu0
    %1565 = vmatprep.mubr.f32.mxu0 0.0
    %1566 = vmatmul.mubr.f32.gmra.mxu0 %v1346
    %v1567 = vpop.f32.mrf.mxu0
    %v1568 = vadd.f32 %v166, %v1567
    %v1569 = vpop.f32.mrf.mxu0
    %1570 = vmatprep.mubr.f32.mxu0 0.0
    %1571 = vmatmul.mubr.f32.gmra.mxu0 %v1349
    %v1572 = vpop.f32.mrf.mxu0
    %v1573 = vadd.f32 %v166, %v1572
    %v1574 = vpop.f32.mrf.mxu0
    %1575 = vdwg.mxu0
    %v1576 = vmax.f32 %v1418, 0.0
    %v1577 = vmax.f32 %v1423, 0.0
    %v1578 = vmax.f32 %v1428, 0.0
    %v1579 = vmax.f32 %v1433, 0.0
    %v1580 = vmax.f32 %v1438, 0.0
    %v1581 = vmax.f32 %v1443, 0.0
    %v1582 = vmax.f32 %v1448, 0.0
    %v1583 = vmax.f32 %v1453, 0.0
    %v1584 = vmax.f32 %v1458, 0.0
    %v1585 = vmax.f32 %v1463, 0.0
    %v1586 = vmax.f32 %v1468, 0.0
    %v1587 = vmax.f32 %v1473, 0.0
    %v1588 = vmax.f32 %v1478, 0.0
    %v1589 = vmax.f32 %v1483, 0.0
    %v1590 = vmax.f32 %v1488, 0.0
    %v1591 = vmax.f32 %v1493, 0.0
    %v1592 = vmax.f32 %v1498, 0.0
    %v1593 = vmax.f32 %v1503, 0.0
    %v1594 = vmax.f32 %v1508, 0.0
    %v1595 = vmax.f32 %v1513, 0.0
    %v1596 = vmax.f32 %v1518, 0.0
    %v1597 = vmax.f32 %v1523, 0.0
    %v1598 = vmax.f32 %v1528, 0.0
    %v1599 = vmax.f32 %v1533, 0.0
    %v1600 = vmax.f32 %v1538, 0.0
    %v1601 = vmax.f32 %v1543, 0.0
    %v1602 = vmax.f32 %v1548, 0.0
    %v1603 = vmax.f32 %v1553, 0.0
    %v1604 = vmax.f32 %v1558, 0.0
    %v1605 = vmax.f32 %v1563, 0.0
    %v1606 = vmax.f32 %v1568, 0.0
    %v1607 = vmax.f32 %v1573, 0.0
    %v1609 = vsel %vm528, %v1576, 0
    %v1612 = vsel %vm528, %v1577, 0
    %v1615 = vsel %vm528, %v1578, 0
    %v1618 = vsel %vm528, %v1579, 0
    %v1621 = vsel %vm528, %v1580, 0
    %v1624 = vsel %vm528, %v1581, 0
    %v1627 = vsel %vm528, %v1582, 0
    %v1630 = vsel %vm528, %v1583, 0
    %v1633 = vsel %vm528, %v1584, 0
    %v1636 = vsel %vm528, %v1585, 0
    %v1639 = vsel %vm528, %v1586, 0
    %v1642 = vsel %vm528, %v1587, 0
    %v1645 = vsel %vm528, %v1588, 0
    %v1648 = vsel %vm528, %v1589, 0
    %v1651 = vsel %vm528, %v1590, 0
    %v1654 = vsel %vm528, %v1591, 0
    %v1657 = vsel %vm528, %v1592, 0
    %v1660 = vsel %vm528, %v1593, 0
    %v1663 = vsel %vm528, %v1594, 0
    %v1666 = vsel %vm528, %v1595, 0
    %v1669 = vsel %vm528, %v1596, 0
    %v1672 = vsel %vm528, %v1597, 0
    %v1675 = vsel %vm528, %v1598, 0
    %v1678 = vsel %vm528, %v1599, 0
    %v1681 = vsel %vm528, %v1600, 0
    %v1684 = vsel %vm528, %v1601, 0
    %v1687 = vsel %vm528, %v1602, 0
    %v1690 = vsel %vm528, %v1603, 0
    %v1693 = vsel %vm528, %v1604, 0
    %v1696 = vsel %vm528, %v1605, 0
    %v1699 = vsel %vm528, %v1606, 0
    %v1702 = vsel %vm528, %v1607, 0
    %1704 = vmatprep.subr.mxu0 0.0
    %1705 = vmatpush1.msra.mxu0 0.0
    %1706 = vmatprep.subr.mxu0 0.0
    %1707 = vmatpush1.msra.mxu0 0.0
    %1708 = vmatprep.subr.mxu0 0.0
    %1709 = vmatpush1.msra.mxu0 0.0
    %1710 = vmatprep.subr.mxu0 0.0
    %1711 = vmatpush1.msra.mxu0 0.0
    %1712 = vmatprep.subr.mxu0 0.0
    %1713 = vmatpush1.msra.mxu0 0.0
    %1714 = vmatprep.subr.mxu0 0.0
    %1715 = vmatpush1.msra.mxu0 0.0
    %1716 = vmatprep.subr.mxu0 0.0
    %1717 = vmatpush1.msra.mxu0 0.0
    %1718 = vmatprep.subr.mxu0 0.0
    %1719 = vmatpush1.msra.mxu0 0.0
    %1720 = vmatprep.subr.mxu0 0.0
    %1721 = vmatpush1.msra.mxu0 %v53
    %1722 = vmatprep.subr.mxu0 0.0
    %1723 = vmatpush1.msra.mxu0 %v52
    %1724 = vmatprep.subr.mxu0 0.0
    %1725 = vmatpush1.msra.mxu0 %v51
    %1726 = vmatprep.subr.mxu0 0.0
    %1727 = vmatpush1.msra.mxu0 %v50
    %1728 = vmatprep.subr.mxu0 0.0
    %1729 = vmatpush1.msra.mxu0 %v49
    %1730 = vmatprep.subr.mxu0 0.0
    %1731 = vmatpush1.msra.mxu0 %v48
    %1732 = vmatprep.subr.mxu0 0.0
    %1733 = vmatpush1.msra.mxu0 %v47
    %1734 = vmatprep.subr.mxu0 0.0
    %1735 = vmatpush1.msra.mxu0 %v46
    %1736 = vmatprep.subr.mxu0 0.0
    %1737 = vmatpush2.msra.mxu0 0.0
    %1738 = vmatprep.subr.mxu0 0.0
    %1739 = vmatpush2.msra.mxu0 0.0
    %1740 = vmatprep.subr.mxu0 0.0
    %1741 = vmatpush2.msra.mxu0 0.0
    %1742 = vmatprep.subr.mxu0 0.0
    %1743 = vmatpush2.msra.mxu0 0.0
    %1744 = vmatprep.subr.mxu0 0.0
    %1745 = vmatpush2.msra.mxu0 0.0
    %1746 = vmatprep.subr.mxu0 0.0
    %1747 = vmatpush2.msra.mxu0 0.0
    %1748 = vmatprep.subr.mxu0 0.0
    %1749 = vmatpush2.msra.mxu0 0.0
    %1750 = vmatprep.subr.mxu0 0.0
    %1751 = vmatpush2.msra.mxu0 0.0
    %1752 = vmatprep.subr.mxu0 0.0
    %1753 = vmatpush2.msra.mxu0 0.0
    %1754 = vmatprep.subr.mxu0 0.0
    %1755 = vmatpush2.msra.mxu0 0.0
    %1756 = vmatprep.subr.mxu0 0.0
    %1757 = vmatpush2.msra.mxu0 0.0
    %1758 = vmatprep.subr.mxu0 0.0
    %1759 = vmatpush2.msra.mxu0 0.0
    %1760 = vmatprep.subr.mxu0 0.0
    %1761 = vmatpush2.msra.mxu0 0.0
    %1762 = vmatprep.subr.mxu0 0.0
    %1763 = vmatpush2.msra.mxu0 0.0
    %1764 = vmatprep.subr.mxu0 0.0
    %1765 = vmatpush2.msra.mxu0 0.0
    %1766 = vmatprep.subr.mxu0 0.0
    %1767 = vmatpush2.msra.mxu0 0.0
    %1768 = vmatprep.mubr.f32.mxu0 0.0
    %1769 = vmatmul.mubr.f32.gmra.mxu0 %v1609
    %v1770 = vpop.f32.mrf.mxu0
    %v1771 = vadd.f32 %v526, %v1770
    %v1772 = vpop.f32.mrf.mxu0
    %1773 = vmatprep.mubr.f32.mxu0 0.0
    %1774 = vmatmul.mubr.f32.gmra.mxu0 %v1612
    %v1775 = vpop.f32.mrf.mxu0
    %v1776 = vadd.f32 %v526, %v1775
    %v1777 = vpop.f32.mrf.mxu0
    %1778 = vmatprep.mubr.f32.mxu0 0.0
    %1779 = vmatmul.mubr.f32.gmra.mxu0 %v1615
    %v1780 = vpop.f32.mrf.mxu0
    %v1781 = vadd.f32 %v526, %v1780
    %v1782 = vpop.f32.mrf.mxu0
    %1783 = vmatprep.mubr.f32.mxu0 0.0
    %1784 = vmatmul.mubr.f32.gmra.mxu0 %v1618
    %v1785 = vpop.f32.mrf.mxu0
    %v1786 = vadd.f32 %v526, %v1785
    %v1787 = vpop.f32.mrf.mxu0
    %1788 = vmatprep.mubr.f32.mxu0 0.0
    %1789 = vmatmul.mubr.f32.gmra.mxu0 %v1621
    %v1790 = vpop.f32.mrf.mxu0
    %v1791 = vadd.f32 %v526, %v1790
    %v1792 = vpop.f32.mrf.mxu0
    %1793 = vmatprep.mubr.f32.mxu0 0.0
    %1794 = vmatmul.mubr.f32.gmra.mxu0 %v1624
    %v1795 = vpop.f32.mrf.mxu0
    %v1796 = vadd.f32 %v526, %v1795
    %v1797 = vpop.f32.mrf.mxu0
    %1798 = vmatprep.mubr.f32.mxu0 0.0
    %1799 = vmatmul.mubr.f32.gmra.mxu0 %v1627
    %v1800 = vpop.f32.mrf.mxu0
    %v1801 = vadd.f32 %v526, %v1800
    %v1802 = vpop.f32.mrf.mxu0
    %1803 = vmatprep.mubr.f32.mxu0 0.0
    %1804 = vmatmul.mubr.f32.gmra.mxu0 %v1630
    %v1805 = vpop.f32.mrf.mxu0
    %v1806 = vadd.f32 %v526, %v1805
    %v1807 = vpop.f32.mrf.mxu0
    %1808 = vmatprep.mubr.f32.mxu0 0.0
    %1809 = vmatmul.mubr.f32.gmra.mxu0 %v1633
    %v1810 = vpop.f32.mrf.mxu0
    %v1811 = vadd.f32 %v526, %v1810
    %v1812 = vpop.f32.mrf.mxu0
    %1813 = vmatprep.mubr.f32.mxu0 0.0
    %1814 = vmatmul.mubr.f32.gmra.mxu0 %v1636
    %v1815 = vpop.f32.mrf.mxu0
    %v1816 = vadd.f32 %v526, %v1815
    %v1817 = vpop.f32.mrf.mxu0
    %1818 = vmatprep.mubr.f32.mxu0 0.0
    %1819 = vmatmul.mubr.f32.gmra.mxu0 %v1639
    %v1820 = vpop.f32.mrf.mxu0
    %v1821 = vadd.f32 %v526, %v1820
    %v1822 = vpop.f32.mrf.mxu0
    %1823 = vmatprep.mubr.f32.mxu0 0.0
    %1824 = vmatmul.mubr.f32.gmra.mxu0 %v1642
    %v1825 = vpop.f32.mrf.mxu0
    %v1826 = vadd.f32 %v526, %v1825
    %v1827 = vpop.f32.mrf.mxu0
    %1828 = vmatprep.mubr.f32.mxu0 0.0
    %1829 = vmatmul.mubr.f32.gmra.mxu0 %v1645
    %v1830 = vpop.f32.mrf.mxu0
    %v1831 = vadd.f32 %v526, %v1830
    %v1832 = vpop.f32.mrf.mxu0
    %1833 = vmatprep.mubr.f32.mxu0 0.0
    %1834 = vmatmul.mubr.f32.gmra.mxu0 %v1648
    %v1835 = vpop.f32.mrf.mxu0
    %v1836 = vadd.f32 %v526, %v1835
    %v1837 = vpop.f32.mrf.mxu0
    %1838 = vmatprep.mubr.f32.mxu0 0.0
    %1839 = vmatmul.mubr.f32.gmra.mxu0 %v1651
    %v1840 = vpop.f32.mrf.mxu0
    %v1841 = vadd.f32 %v526, %v1840
    %v1842 = vpop.f32.mrf.mxu0
    %1843 = vmatprep.mubr.f32.mxu0 0.0
    %1844 = vmatmul.mubr.f32.gmra.mxu0 %v1654
    %v1845 = vpop.f32.mrf.mxu0
    %v1846 = vadd.f32 %v526, %v1845
    %v1847 = vpop.f32.mrf.mxu0
    %1848 = vmatprep.mubr.f32.mxu0 0.0
    %1849 = vmatmul.mubr.f32.gmra.mxu0 %v1657
    %v1850 = vpop.f32.mrf.mxu0
    %v1851 = vadd.f32 %v526, %v1850
    %v1852 = vpop.f32.mrf.mxu0
    %1853 = vmatprep.mubr.f32.mxu0 0.0
    %1854 = vmatmul.mubr.f32.gmra.mxu0 %v1660
    %v1855 = vpop.f32.mrf.mxu0
    %v1856 = vadd.f32 %v526, %v1855
    %v1857 = vpop.f32.mrf.mxu0
    %1858 = vmatprep.mubr.f32.mxu0 0.0
    %1859 = vmatmul.mubr.f32.gmra.mxu0 %v1663
    %v1860 = vpop.f32.mrf.mxu0
    %v1861 = vadd.f32 %v526, %v1860
    %v1862 = vpop.f32.mrf.mxu0
    %1863 = vmatprep.mubr.f32.mxu0 0.0
    %1864 = vmatmul.mubr.f32.gmra.mxu0 %v1666
    %v1865 = vpop.f32.mrf.mxu0
    %v1866 = vadd.f32 %v526, %v1865
    %v1867 = vpop.f32.mrf.mxu0
    %1868 = vmatprep.mubr.f32.mxu0 0.0
    %1869 = vmatmul.mubr.f32.gmra.mxu0 %v1669
    %v1870 = vpop.f32.mrf.mxu0
    %v1871 = vadd.f32 %v526, %v1870
    %v1872 = vpop.f32.mrf.mxu0
    %1873 = vmatprep.mubr.f32.mxu0 0.0
    %1874 = vmatmul.mubr.f32.gmra.mxu0 %v1672
    %v1875 = vpop.f32.mrf.mxu0
    %v1876 = vadd.f32 %v526, %v1875
    %v1877 = vpop.f32.mrf.mxu0
    %1878 = vmatprep.mubr.f32.mxu0 0.0
    %1879 = vmatmul.mubr.f32.gmra.mxu0 %v1675
    %v1880 = vpop.f32.mrf.mxu0
    %v1881 = vadd.f32 %v526, %v1880
    %v1882 = vpop.f32.mrf.mxu0
    %1883 = vmatprep.mubr.f32.mxu0 0.0
    %1884 = vmatmul.mubr.f32.gmra.mxu0 %v1678
    %v1885 = vpop.f32.mrf.mxu0
    %v1886 = vadd.f32 %v526, %v1885
    %v1887 = vpop.f32.mrf.mxu0
    %1888 = vmatprep.mubr.f32.mxu0 0.0
    %1889 = vmatmul.mubr.f32.gmra.mxu0 %v1681
    %v1890 = vpop.f32.mrf.mxu0
    %v1891 = vadd.f32 %v526, %v1890
    %v1892 = vpop.f32.mrf.mxu0
    %1893 = vmatprep.mubr.f32.mxu0 0.0
    %1894 = vmatmul.mubr.f32.gmra.mxu0 %v1684
    %v1895 = vpop.f32.mrf.mxu0
    %v1896 = vadd.f32 %v526, %v1895
    %v1897 = vpop.f32.mrf.mxu0
    %1898 = vmatprep.mubr.f32.mxu0 0.0
    %1899 = vmatmul.mubr.f32.gmra.mxu0 %v1687
    %v1900 = vpop.f32.mrf.mxu0
    %v1901 = vadd.f32 %v526, %v1900
    %v1902 = vpop.f32.mrf.mxu0
    %1903 = vmatprep.mubr.f32.mxu0 0.0
    %1904 = vmatmul.mubr.f32.gmra.mxu0 %v1690
    %v1905 = vpop.f32.mrf.mxu0
    %v1906 = vadd.f32 %v526, %v1905
    %v1907 = vpop.f32.mrf.mxu0
    %1908 = vmatprep.mubr.f32.mxu0 0.0
    %1909 = vmatmul.mubr.f32.gmra.mxu0 %v1693
    %v1910 = vpop.f32.mrf.mxu0
    %v1911 = vadd.f32 %v526, %v1910
    %v1912 = vpop.f32.mrf.mxu0
    %1913 = vmatprep.mubr.f32.mxu0 0.0
    %1914 = vmatmul.mubr.f32.gmra.mxu0 %v1696
    %v1915 = vpop.f32.mrf.mxu0
    %v1916 = vadd.f32 %v526, %v1915
    %v1917 = vpop.f32.mrf.mxu0
    %1918 = vmatprep.mubr.f32.mxu0 0.0
    %1919 = vmatmul.mubr.f32.gmra.mxu0 %v1699
    %v1920 = vpop.f32.mrf.mxu0
    %v1921 = vadd.f32 %v526, %v1920
    %v1922 = vpop.f32.mrf.mxu0
    %1923 = vmatprep.mubr.f32.mxu0 0.0
    %1924 = vmatmul.mubr.f32.gmra.mxu0 %v1702
    %v1925 = vpop.f32.mrf.mxu0
    %v1926 = vadd.f32 %v526, %v1925
    %v1927 = vpop.f32.mrf.mxu0
    %1928 = vdwg.mxu0
    %v1929 = vmax.f32 %v1771, 0.0
    %v1930 = vmax.f32 %v1776, 0.0
    %v1931 = vmax.f32 %v1781, 0.0
    %v1932 = vmax.f32 %v1786, 0.0
    %v1933 = vmax.f32 %v1791, 0.0
    %v1934 = vmax.f32 %v1796, 0.0
    %v1935 = vmax.f32 %v1801, 0.0
    %v1936 = vmax.f32 %v1806, 0.0
    %v1937 = vmax.f32 %v1811, 0.0
    %v1938 = vmax.f32 %v1816, 0.0
    %v1939 = vmax.f32 %v1821, 0.0
    %v1940 = vmax.f32 %v1826, 0.0
    %v1941 = vmax.f32 %v1831, 0.0
    %v1942 = vmax.f32 %v1836, 0.0
    %v1943 = vmax.f32 %v1841, 0.0
    %v1944 = vmax.f32 %v1846, 0.0
    %v1945 = vmax.f32 %v1851, 0.0
    %v1946 = vmax.f32 %v1856, 0.0
    %v1947 = vmax.f32 %v1861, 0.0
    %v1948 = vmax.f32 %v1866, 0.0
    %v1949 = vmax.f32 %v1871, 0.0
    %v1950 = vmax.f32 %v1876, 0.0
    %v1951 = vmax.f32 %v1881, 0.0
    %v1952 = vmax.f32 %v1886, 0.0
    %v1953 = vmax.f32 %v1891, 0.0
    %v1954 = vmax.f32 %v1896, 0.0
    %v1955 = vmax.f32 %v1901, 0.0
    %v1956 = vmax.f32 %v1906, 0.0
    %v1957 = vmax.f32 %v1911, 0.0
    %v1958 = vmax.f32 %v1916, 0.0
    %v1959 = vmax.f32 %v1921, 0.0
    %v1960 = vmax.f32 %v1926, 0.0
    %v1962 = vsel %vm168, %v1929, 0
    %v1965 = vsel %vm168, %v1930, 0
    %v1968 = vsel %vm168, %v1931, 0
    %v1971 = vsel %vm168, %v1932, 0
    %v1974 = vsel %vm168, %v1933, 0
    %v1977 = vsel %vm168, %v1934, 0
    %v1980 = vsel %vm168, %v1935, 0
    %v1983 = vsel %vm168, %v1936, 0
    %v1986 = vsel %vm168, %v1937, 0
    %v1989 = vsel %vm168, %v1938, 0
    %v1992 = vsel %vm168, %v1939, 0
    %v1995 = vsel %vm168, %v1940, 0
    %v1998 = vsel %vm168, %v1941, 0
    %v2001 = vsel %vm168, %v1942, 0
    %v2004 = vsel %vm168, %v1943, 0
    %v2007 = vsel %vm168, %v1944, 0
    %v2010 = vsel %vm168, %v1945, 0
    %v2013 = vsel %vm168, %v1946, 0
    %v2016 = vsel %vm168, %v1947, 0
    %v2019 = vsel %vm168, %v1948, 0
    %v2022 = vsel %vm168, %v1949, 0
    %v2025 = vsel %vm168, %v1950, 0
    %v2028 = vsel %vm168, %v1951, 0
    %v2031 = vsel %vm168, %v1952, 0
    %v2034 = vsel %vm168, %v1953, 0
    %v2037 = vsel %vm168, %v1954, 0
    %v2040 = vsel %vm168, %v1955, 0
    %v2043 = vsel %vm168, %v1956, 0
    %v2046 = vsel %vm168, %v1957, 0
    %v2049 = vsel %vm168, %v1958, 0
    %v2052 = vsel %vm168, %v1959, 0
    %v2055 = vsel %vm168, %v1960, 0
    %2057 = vmatprep.subr.mxu0 0.0
    %2058 = vmatpush1.xpose.msra.mxu0 %v2007
    %2059 = vmatprep.subr.mxu0 0.0
    %2060 = vmatpush1.xpose.msra.mxu0 %v2004
    %2061 = vmatprep.subr.mxu0 0.0
    %2062 = vmatpush1.xpose.msra.mxu0 %v2001
    %2063 = vmatprep.subr.mxu0 0.0
    %2064 = vmatpush1.xpose.msra.mxu0 %v1998
    %2065 = vmatprep.subr.mxu0 0.0
    %2066 = vmatpush1.xpose.msra.mxu0 %v1995
    %2067 = vmatprep.subr.mxu0 0.0
    %2068 = vmatpush1.xpose.msra.mxu0 %v1992
    %2069 = vmatprep.subr.mxu0 0.0
    %2070 = vmatpush1.xpose.msra.mxu0 %v1989
    %2071 = vmatprep.subr.mxu0 0.0
    %2072 = vmatpush1.xpose.msra.mxu0 %v1986
    %2073 = vmatprep.subr.mxu0 0.0
    %2074 = vmatpush1.xpose.msra.mxu0 %v1983
    %2075 = vmatprep.subr.mxu0 0.0
    %2076 = vmatpush1.xpose.msra.mxu0 %v1980
    %2077 = vmatprep.subr.mxu0 0.0
    %2078 = vmatpush1.xpose.msra.mxu0 %v1977
    %2079 = vmatprep.subr.mxu0 0.0
    %2080 = vmatpush1.xpose.msra.mxu0 %v1974
    %2081 = vmatprep.subr.mxu0 0.0
    %2082 = vmatpush1.xpose.msra.mxu0 %v1971
    %2083 = vmatprep.subr.mxu0 0.0
    %2084 = vmatpush1.xpose.msra.mxu0 %v1968
    %2085 = vmatprep.subr.mxu0 0.0
    %2086 = vmatpush1.xpose.msra.mxu0 %v1965
    %2087 = vmatprep.subr.mxu0 0.0
    %2088 = vmatpush1.xpose.msra.mxu0 %v1962
    %2089 = vmatprep.subr.mxu0 0.0
    %2090 = vmatpush2.xpose.msra.mxu0 %v2055
    %2091 = vmatprep.subr.mxu0 0.0
    %2092 = vmatpush2.xpose.msra.mxu0 %v2052
    %2093 = vmatprep.subr.mxu0 0.0
    %2094 = vmatpush2.xpose.msra.mxu0 %v2049
    %2095 = vmatprep.subr.mxu0 0.0
    %2096 = vmatpush2.xpose.msra.mxu0 %v2046
    %2097 = vmatprep.subr.mxu0 0.0
    %2098 = vmatpush2.xpose.msra.mxu0 %v2043
    %2099 = vmatprep.subr.mxu0 0.0
    %2100 = vmatpush2.xpose.msra.mxu0 %v2040
    %2101 = vmatprep.subr.mxu0 0.0
    %2102 = vmatpush2.xpose.msra.mxu0 %v2037
    %2103 = vmatprep.subr.mxu0 0.0
    %2104 = vmatpush2.xpose.msra.mxu0 %v2034
    %2105 = vmatprep.subr.mxu0 0.0
    %2106 = vmatpush2.xpose.msra.mxu0 %v2031
    %2107 = vmatprep.subr.mxu0 0.0
    %2108 = vmatpush2.xpose.msra.mxu0 %v2028
    %2109 = vmatprep.subr.mxu0 0.0
    %2110 = vmatpush2.xpose.msra.mxu0 %v2025
    %2111 = vmatprep.subr.mxu0 0.0
    %2112 = vmatpush2.xpose.msra.mxu0 %v2022
    %2113 = vmatprep.subr.mxu0 0.0
    %2114 = vmatpush2.xpose.msra.mxu0 %v2019
    %2115 = vmatprep.subr.mxu0 0.0
    %2116 = vmatpush2.xpose.msra.mxu0 %v2016
    %2117 = vmatprep.subr.mxu0 0.0
    %2118 = vmatpush2.xpose.msra.mxu0 %v2013
    %2119 = vmatprep.subr.mxu0 0.0
    %2120 = vmatpush2.xpose.msra.mxu0 %v2010
    %2121 = vmatprep.mubr.f32.mxu0 0.0
    %2122 = vmatmul.mubr.f32.gmra.mxu0 %v893
    %v2123 = vpop.f32.mrf.mxu0
    %v2124 = vadd.f32 %v885, %v2123
    %v2125 = vpop.f32.mrf.mxu0
    %v2126 = vadd.f32 %v885, %v2125
    %2127 = vmatprep.mubr.f32.mxu0 0.0
    %2128 = vmatmul.mubr.f32.gmra.mxu0 %v896
    %v2129 = vpop.f32.mrf.mxu0
    %v2130 = vadd.f32 %v890, %v2129
    %v2131 = vpop.f32.mrf.mxu0
    %v2132 = vadd.f32 %v890, %v2131
    %2133 = vdwg.mxu0
    %v2134 = vmax.f32 %v2124, 0.0
    %v2135 = vmax.f32 %v2126, 0.0
    %v2136 = vmax.f32 %v2130, 0.0
    %v2137 = vmax.f32 %v2132, 0.0
    %2138 = vmatprep.subr.mxu0 0.0
    %2139 = vmatpush1.msra.mxu0 0.0
    %2140 = vmatprep.subr.mxu0 0.0
    %2141 = vmatpush1.msra.mxu0 0.0
    %2142 = vmatprep.subr.mxu0 0.0
    %2143 = vmatpush1.msra.mxu0 0.0
    %2144 = vmatprep.subr.mxu0 0.0
    %2145 = vmatpush1.msra.mxu0 0.0
    %2146 = vmatprep.subr.mxu0 0.0
    %2147 = vmatpush1.msra.mxu0 0.0
    %2148 = vmatprep.subr.mxu0 0.0
    %2149 = vmatpush1.msra.mxu0 0.0
    %2150 = vmatprep.subr.mxu0 0.0
    %2151 = vmatpush1.msra.mxu0 0.0
    %2152 = vmatprep.subr.mxu0 0.0
    %2153 = vmatpush1.msra.mxu0 0.0
    %2154 = vmatprep.subr.mxu0 0.0
    %2155 = vmatpush1.msra.mxu0 0.0
    %2156 = vmatprep.subr.mxu0 0.0
    %2157 = vmatpush1.msra.mxu0 0.0
    %2158 = vmatprep.subr.mxu0 0.0
    %2159 = vmatpush1.msra.mxu0 0.0
    %2160 = vmatprep.subr.mxu0 0.0
    %2161 = vmatpush1.msra.mxu0 0.0
    %2162 = vmatprep.subr.mxu0 0.0
    %2163 = vmatpush1.msra.mxu0 0.0
    %2164 = vmatprep.subr.mxu0 0.0
    %2165 = vmatpush1.msra.mxu0 0.0
    %2166 = vmatprep.subr.mxu0 %v2137
    %2167 = vmatpush1.msra.mxu0 %v2136
    %2168 = vmatprep.subr.mxu0 %v2135
    %2169 = vmatpush1.msra.mxu0 %v2134
    %2170 = vmatprep.subr.mxu0 0.0
    %2171 = vmatpush2.msra.mxu0 0.0
    %2172 = vmatprep.subr.mxu0 0.0
    %2173 = vmatpush2.msra.mxu0 0.0
    %2174 = vmatprep.subr.mxu0 0.0
    %2175 = vmatpush2.msra.mxu0 0.0
    %2176 = vmatprep.subr.mxu0 0.0
    %2177 = vmatpush2.msra.mxu0 0.0
    %2178 = vmatprep.subr.mxu0 0.0
    %2179 = vmatpush2.msra.mxu0 0.0
    %2180 = vmatprep.subr.mxu0 0.0
    %2181 = vmatpush2.msra.mxu0 0.0
    %2182 = vmatprep.subr.mxu0 0.0
    %2183 = vmatpush2.msra.mxu0 0.0
    %2184 = vmatprep.subr.mxu0 0.0
    %2185 = vmatpush2.msra.mxu0 0.0
    %2186 = vmatprep.subr.mxu0 0.0
    %2187 = vmatpush2.msra.mxu0 0.0
    %2188 = vmatprep.subr.mxu0 0.0
    %2189 = vmatpush2.msra.mxu0 0.0
    %2190 = vmatprep.subr.mxu0 0.0
    %2191 = vmatpush2.msra.mxu0 0.0
    %2192 = vmatprep.subr.mxu0 0.0
    %2193 = vmatpush2.msra.mxu0 0.0
    %2194 = vmatprep.subr.mxu0 0.0
    %2195 = vmatpush2.msra.mxu0 0.0
    %2196 = vmatprep.subr.mxu0 0.0
    %2197 = vmatpush2.msra.mxu0 0.0
    %2198 = vmatprep.subr.mxu0 0.0
    %2199 = vmatpush2.msra.mxu0 0.0
    %2200 = vmatprep.subr.mxu0 0.0
    %2201 = vmatpush2.msra.mxu0 0.0
    %2202 = vmatprep.mubr.f32.mxu0 0.0
    %2203 = vmatmul.mubr.f32.gmra.mxu0 %v1082
    %v2204 = vpop.f32.mrf.mxu0
    %v2205 = vadd.f32 %v1078, %v2204
    %v2206 = vpop.f32.mrf.mxu0
    %v2207 = vadd.f32 %v1078, %v2206
    %2208 = vdwg.mxu0
    %v2209 = vmax.f32 %v2205, 0.0
    %v2210 = vmax.f32 %v2207, 0.0
    %v2211 = vmul.f32 %v2209, %v1160
    %v2212 = vmul.f32 %v2210, %v1160
    %v2213 = vrot.slane %v2211, 4
    %v2214 = vadd.f32 %v2211, %v2213
    %v2215 = vrot.slane %v2214, 2
    %v2216 = vadd.f32 %v2214, %v2215
    %v2217 = vrot.slane %v2216, 1
    %v2218 = vadd.f32 %v2216, %v2217
    %v2219 = vrot.slane %v2212, 4
    %v2220 = vadd.f32 %v2212, %v2219
    %v2221 = vrot.slane %v2220, 2
    %v2222 = vadd.f32 %v2220, %v2221
    %v2223 = vrot.slane %v2222, 1
    %v2224 = vadd.f32 %v2222, %v2223
    %v2225 = vadd.f32 %v2218, %v1184
    %v2226 = vadd.f32 %v2224, %v1184
    %v2227 = vxor.u32 %v2225, 2147483648
    %v2228 = vxor.u32 %v2226, 2147483648
    %v2229 = vmul.f32 %v2227, 1.442695
    %v2230 = vpow.pop %v2229
    %v2231 = vmul.f32 %v2228, 1.442695
    %v2232 = vpow.pop %v2231
    %v2233 = vadd.f32 %v2230, 1.0
    %v2234 = vadd.f32 %v2232, 1.0
    %v2235 = vrcp.pop %v2233
    %v2236 = vmul.f32 1.0, %v2235
    %v2237 = vrcp.pop %v2234
    %v2238 = vmul.f32 1.0, %v2237
    %v2241 = vcombine.low %v2236, %v2238
    %v2243 = vunpack.c.l.s4 1966171168
    %v2244 = vunpack.c.0.s8 %v2243
    %v2245 = vlaneseq
    %v2246 = vshrl.u32 %v2245, 7
    %v2247 = vsub.s32 %v2244, %v2246
    %v2248 = vrot.slane %v2241, %v2247
    %v2250 = vunpack.c.l.s4 1966171168
    %v2251 = vunpack.c.0.s8 %v2250
    %v2252 = vlaneseq
    %v2253 = vshrl.u32 %v2252, 7
    %v2254 = vsub.s32 %v2251, %v2253
    %v2255 = vrot.slane %v2248, %v2254
    %s2257 = scalar_lea.vmem [#allocation3], 2
    %2258 = vst.msk [vmem:[%s2257] sm:$0x3] %vm1220, %v2255
    // Predicated region
    $region46: #{tpu_custom_call.1} parent=1 // pred_check
      _
    $region47: #{tpu_custom_call.1} parent=1 // pred_check_branch
      %2260 = sbr.rel (0) target = $region49
    $region48: #{tpu_custom_call.1} parent=1 // pred_region
      %s2262 = ssub.s32 64, 64
      %2263 = vsyncadd [#allocation4], %s2262
      %s2265 = sshll.u32 [#allocation3], 4
      %s2266 = int_to_ptr.vmem [resolvable:$true] %s2265
      %2268 = dma.vmem_to_hbm [thread:$0]  %s2266, 64, %s11, [#allocation4]
    $region49: #{tpu_custom_call.1} parent=1 // pred_fallthru
      _
    // Predicated region
    $region50: #{tpu_custom_call.1} parent=1 // pred_check
      _
    $region51: #{tpu_custom_call.1} parent=1 // pred_check_branch
      %2270 = sbr.rel (0) target = $region53
    $region52: #{tpu_custom_call.1} parent=1 // pred_region
      %2271 = dma.done [#allocation4], 64
    $region53: #{tpu_custom_call.1} parent=1 // pred_fallthru
      _
    %2272 = vsyncpa [#allocation4], 1

</llo_original>
